<compile_context>
chip_gen: v7x
topology: tpu7x:2x2x1
jax: 0.10.0
libtpu: 0.0.40
codegen_flags: <defaults>
</compile_context>

<pallas_src>
import functools

import jax
import jax.numpy as jnp
from jax import lax
from jax.experimental import pallas as pl
from jax.experimental.pallas import tpu as pltpu


# ------------------------------ Pallas kernel -------------------------------

def _attnpool_kernel(x_ref, pos0_ref, pospix_ref,
                     wq_ref, bq_ref, wkv_ref, bkv_ref,
                     wc_ref, bc_ref, mcn_ref, mnc_ref, o_ref):
    """Fused AttentionPool2d forward for one block of B batch elements.

    x_ref:      (B, HW, C)    pixel features, channel-last, compute dtype (bf16)
    pos0_ref:   (1, C)        positional embedding of the mean token
    pospix_ref: (HW, C)       positional embedding of the pixel tokens
    wq_ref:     (C, C)        q projection, (in, out), attention scale folded in
    bq_ref:     (1, C)  f32   scale folded in
    wkv_ref:    (C, 2C)       fused [Wk | Wv] projection, (in, out)
    bkv_ref:    (1, 2C) f32   fused [bk | bv]
    wc_ref:     (C, Dout)     output projection; bc_ref: (1, Dout) f32
    mcn_ref:    (C, nh) f32   head indicator (1 where channel c is in head h)
    mnc_ref:    (nh, C) f32   its transpose
    o_ref:      (1, B, Dout)  f32 — mean-token output only
    """
    f32 = jnp.float32
    B, HW, C = x_ref.shape
    nh = mcn_ref.shape[1]
    cdt = x_ref.dtype                       # MXU operand dtype (bf16 or f32)

    x = x_ref[...]                          # (B, HW, C)

    # Token 0 (spatial mean): f32 sublane-sum accumulation, then + pos[0].
    mean = jnp.sum(x.astype(f32), axis=1) * (1.0 / HW)             # (B, C)
    tok0 = (mean + pos0_ref[...].astype(f32)).astype(cdt)          # (B, C)

    # Pixel tokens: plain VPU add of the positional embedding.
    xp = (x + pospix_ref[...][None, :, :]).reshape(B * HW, C)      # (B*HW, C)

    # Projections: shared weights feed tall 2-D MXU matmuls; k and v come
    # from one fused (C, 2C) weight.  Accumulation is f32.
    q   = jnp.dot(tok0, wq_ref[...],  preferred_element_type=f32) + bq_ref[...]   # (B, C)
    kv0 = jnp.dot(tok0, wkv_ref[...], preferred_element_type=f32) + bkv_ref[...]  # (B, 2C)
    kvp = jnp.dot(xp,   wkv_ref[...], preferred_element_type=f32) + bkv_ref[...]  # (B*HW, 2C)

    k0, v0 = kv0[:, :C], kv0[:, C:]                                 # (B, C)
    kp = kvp[:, :C].reshape(B, HW, C)                               # (B, HW, C)
    vp = kvp[:, C:].reshape(B, HW, C)                               # (B, HW, C)

    # Per-head scores without any head reshape:
    #   s[., h] = sum_{c in head h} k[., c] * q[., c]     (scale already in q)
    mcn = mcn_ref[...]
    s0 = jnp.dot(k0 * q, mcn, preferred_element_type=f32)           # (B, nh)
    sp = jnp.dot((kp * q[:, None, :]).reshape(B * HW, C), mcn,
                 preferred_element_type=f32).reshape(B, HW, nh)     # (B, HW, nh)

    # Softmax over the L = HW + 1 keys (f32 vector math; recip on the EUP).
    m = jnp.maximum(jnp.max(sp, axis=1), s0)                        # (B, nh)
    p0 = jnp.exp(s0 - m)                                            # (B, nh)
    pp = jnp.exp(sp - m[:, None, :])                                # (B, HW, nh)
    inv = pl.reciprocal(jnp.sum(pp, axis=1) + p0, approx=True)      # (B, nh)
    w0 = p0 * inv                                                   # (B, nh)
    wp = pp * inv[:, None, :]                                       # (B, HW, nh)

    # Attention-weighted value sum: broadcast head weights to lanes with a
    # tiny constant matmul, then contract over the key axis.
    mnc = mnc_ref[...]
    w0l = jnp.dot(w0, mnc, preferred_element_type=f32)              # (B, C)
    wpl = jnp.dot(wp.reshape(B * HW, nh), mnc,
                  preferred_element_type=f32).reshape(B, HW, C)     # (B, HW, C)
    attn = w0l * v0 + jnp.sum(wpl * vp, axis=1)                     # (B, C)

    # Output projection.
    y = jnp.dot(attn.astype(cdt), wc_ref[...],
                preferred_element_type=f32) + bc_ref[...]           # (B, Dout)
    o_ref[0] = y.astype(o_ref.dtype)


# --------------------------------- wrapper -----------------------------------

def _pick_batch_block(n, hw):
    """Batch elements per grid step: fill the MXU M dimension (aim for
    B*HW >= 256 pixel-token rows) while keeping >= 2 grid steps when possible
    so both v7x TensorCores get work."""
    target = max(1, pl.cdiv(256, max(hw, 1)))
    divisors = [d for d in range(1, n + 1) if n % d == 0]
    b = max([d for d in divisors if d <= target] or [1])
    if n // b < 2:
        two_step = [d for d in divisors if n // d >= 2]
        if two_step:
            b = max(two_step)
    return b


def _vmem_limit_bytes(B, HW, C, Dout, L, nh, op_itemsize):
    """Scoped-VMEM budget: single-buffered constants + double-buffered x/out
    blocks + in-kernel f32 temporaries, with headroom."""
    f4 = 4
    consts = ((3 * C * C + C * Dout + L * C) * op_itemsize      # wq, wkv, wc, pos
              + (3 * C + Dout) * f4                              # biases
              + 2 * nh * C * f4)                                 # mcn, mnc
    blocks = 2 * B * HW * C * op_itemsize + 2 * B * Dout * f4    # pipelined I/O
    temps = B * HW * (4 * C + 3 * nh) * f4 + 12 * B * C * f4     # kv, scores, ...
    return min(int(1.6 * (consts + blocks + temps)) + (16 << 20), 100 << 20)


@functools.partial(jax.jit,
                   static_argnames=("num_heads", "compute_dtype",
                                    "single_buffer_weights"))
def attention_pool_2d(x_nchw, params, *, num_heads,
                      compute_dtype=jnp.bfloat16, single_buffer_weights=True):
    """Forward pass matching AttentionPool2d.forward (returns x[0])."""
    N, C, H, W = x_nchw.shape
    HW = H * W
    L = HW + 1
    assert C % num_heads == 0
    head_dim = C // num_heads
    scale = float(head_dim) ** -0.5
    f32 = jnp.float32
    cdt = compute_dtype

    # Channel-last pixel tokens (fused into the surrounding graph by jit).
    x_tok = jnp.transpose(x_nchw.reshape(N, C, HW), (0, 2, 1)).astype(cdt)

    # Parameter folding: Linear weights -> (in, out); attention scale folded
    # into q; Wk|Wv fused; MXU operands in compute dtype, biases kept f32.
    pos = params['pos'].astype(f32)
    pos0 = pos[0:1, :].astype(cdt)                                   # (1, C)
    pospix = pos[1:, :].astype(cdt)                                  # (HW, C)
    wq = (params['wq'].T.astype(f32) * scale).astype(cdt)            # (C, C)
    bq = (params['bq'].astype(f32) * scale).reshape(1, C)            # (1, C) f32
    wkv = jnp.concatenate([params['wk'].T, params['wv'].T], axis=1).astype(cdt)  # (C, 2C)
    bkv = jnp.concatenate([params['bk'], params['bv']]).reshape(1, 2 * C).astype(f32)
    wc = params['wc'].T.astype(cdt)                                  # (C, Dout)
    bc = params['bc'].reshape(1, -1).astype(f32)                     # (1, Dout)
    Dout = wc.shape[1]

    # Head indicator matrices (channel -> head one-hot) and its transpose.
    head_of_c = jnp.arange(C) // head_dim
    mcn = (head_of_c[:, None] == jnp.arange(num_heads)[None, :]).astype(f32)  # (C, nh)
    mnc = mcn.T                                                                # (nh, C)

    B = _pick_batch_block(N, HW)
    G = N // B

    def const_spec(shape):
        index_map = lambda i: (0,) * len(shape)
        if single_buffer_weights:
            # Grid-invariant operands: double-buffering them is pure VMEM waste.
            return pl.BlockSpec(shape, index_map, pipeline_mode=pl.Buffered(1))
        return pl.BlockSpec(shape, index_map)

    vmem_limit = _vmem_limit_bytes(B, HW, C, Dout, L, num_heads,
                                   jnp.dtype(cdt).itemsize)

    out = pl.pallas_call(
        _attnpool_kernel,
        out_shape=jax.ShapeDtypeStruct((G, B, Dout), jnp.float32),
        grid_spec=pltpu.PrefetchScalarGridSpec(
            num_scalar_prefetch=0,
            grid=(G,),
            in_specs=[
                pl.BlockSpec((B, HW, C), lambda i: (i, 0, 0)),   # x (batch block)
                const_spec((1, C)),             # pos0
                const_spec((HW, C)),            # pos pixels
                const_spec((C, C)),             # wq (scale folded)
                const_spec((1, C)),             # bq
                const_spec((C, 2 * C)),         # wkv (fused k|v)
                const_spec((1, 2 * C)),         # bkv
                const_spec((C, Dout)),          # wc
                const_spec((1, Dout)),          # bc
                const_spec((C, num_heads)),     # mcn
                const_spec((num_heads, C)),     # mnc
            ],
            out_specs=pl.BlockSpec((1, B, Dout), lambda i: (i, 0, 0)),
        ),
        compiler_params=pltpu.CompilerParams(
            dimension_semantics=("parallel",),
            vmem_limit_bytes=vmem_limit),
    )(x_tok, pos0, pospix, wq, bq, wkv, bkv, wc, bc, mcn, mnc)
    return out.reshape(N, Dout)


# ------------------------ deterministic parameters ---------------------------

def init_params(key, spacial_dim, embed_dim, output_dim):
    L = spacial_dim ** 2 + 1
    ks = jax.random.split(key, 9)

    def w(k, o, i):
        return 0.2 * jax.random.normal(k, (o, i), jnp.float32)   # PyTorch (out, in)

    def b(k, o):
        return 0.1 * jax.random.normal(k, (o,), jnp.float32)

    return {
        'pos': jax.random.normal(ks[0], (L, embed_dim), jnp.float32) / (embed_dim ** 0.5),
        'wq': w(ks[1], embed_dim, embed_dim), 'bq': b(ks[2], embed_dim),
        'wk': w(ks[3], embed_dim, embed_dim), 'bk': b(ks[4], embed_dim),
        'wv': w(ks[5], embed_dim, embed_dim), 'bv': b(ks[6], embed_dim),
        'wc': w(ks[7], output_dim, embed_dim), 'bc': b(ks[8], output_dim),
    }


# --------------------------- pure-JAX reference -------------------------------

def ref_attention_pool_2d(x_nchw, params, num_heads):
    N, C, H, W = x_nchw.shape
    HW = H * W
    L = HW + 1
    head_dim = C // num_heads
    scale = float(head_dim) ** -0.5
    hi = lax.Precision.HIGHEST

    x = jnp.transpose(x_nchw.reshape(N, C, HW), (0, 2, 1))                 # (N, HW, C)
    tokens = jnp.concatenate([x.mean(axis=1, keepdims=True), x], axis=1)   # (N, L, C)
    tokens = tokens + params['pos'][None]

    def proj(t, wp, bp):
        return jnp.einsum('nlc,dc->nld', t, wp, precision=hi) + bp

    q = proj(tokens, params['wq'], params['bq']) * scale
    k = proj(tokens, params['wk'], params['bk'])
    v = proj(tokens, params['wv'], params['bv'])

    qh = q.reshape(N, L, num_heads, head_dim)
    kh = k.reshape(N, L, num_heads, head_dim)
    vh = v.reshape(N, L, num_heads, head_dim)
    s = jnp.einsum('nqhd,nkhd->nhqk', qh, kh, precision=hi)
    w_attn = jax.nn.softmax(s, axis=-1)
    o = jnp.einsum('nhqk,nkhd->nqhd', w_attn, vh, precision=hi).reshape(N, L, C)
    out = jnp.einsum('nlc,dc->nld', o, params['wc'], precision=hi) + params['bc']
    return out[:, 0, :]                                                    # (N, Dout)


# ----------------------------------- main -------------------------------------

if __name__ == "__main__":
    N = 4
    spacial_dim, embed_dim, num_heads, output_dim = 4, 32, 4, 16

    root = jax.random.PRNGKey(0)
    kx, kp = jax.random.split(root)
    x = jax.random.normal(kx, (N, embed_dim, spacial_dim, spacial_dim), jnp.float32)
    params = init_params(kp, spacial_dim, embed_dim, output_dim)

    try:
        out = jax.block_until_ready(
            attention_pool_2d(x, params, num_heads=num_heads))
    except Exception:
        # Fallback for environments where BlockSpec.pipeline_mode /
        # pl.Buffered(1) (single-buffered weights) is not available.
        out = jax.block_until_ready(
            attention_pool_2d(x, params, num_heads=num_heads,
                              single_buffer_weights=False))

    ref = ref_attention_pool_2d(x, params, num_heads)

    assert out.shape == (N, output_dim)
    # bf16 MXU operands + approx-reciprocal softmax vs an f32 HIGHEST-precision
    # reference: worst-case error at these magnitudes is ~2e-2, so 6e-2 keeps
    # ~3x margin while still catching real bugs (missing bias/scale, wrong
    # head grouping).
    assert jnp.allclose(out, ref, atol=6e-2, rtol=6e-2), "AttentionPool2d mismatch"

    print("KERNEL_OK")
</pallas_src>

<mosaic_0001>
module attributes {stable_mosaic.version = 11 : i64} {
  func.func @_attnpool_kernel(%arg0: i32, %arg1: memref<2x16x32xbf16, #tpu.memory_space<vmem>>, %arg2: memref<1x32xbf16, #tpu.memory_space<vmem>>, %arg3: memref<16x32xbf16, #tpu.memory_space<vmem>>, %arg4: memref<32x32xbf16, #tpu.memory_space<vmem>>, %arg5: memref<1x32xf32, #tpu.memory_space<vmem>>, %arg6: memref<32x64xbf16, #tpu.memory_space<vmem>>, %arg7: memref<1x64xf32, #tpu.memory_space<vmem>>, %arg8: memref<32x16xbf16, #tpu.memory_space<vmem>>, %arg9: memref<1x16xf32, #tpu.memory_space<vmem>>, %arg10: memref<32x4xf32, #tpu.memory_space<vmem>>, %arg11: memref<4x32xf32, #tpu.memory_space<vmem>>, %arg12: memref<1x2x16xf32, #tpu.memory_space<vmem>>) attributes {dimension_semantics = [#tpu.dimension_semantics<parallel>], iteration_bounds = array<i64: 2>, scalar_prefetch = 0 : i64, scratch_operands = 0 : i64, tpu.core_type = #tpu.core_type<tc>, window_params = [{transform_indices = @transform_0, window_bounds = array<i64: 2, 16, 32>}, {pipeline_mode = #tpu.pipeline_mode<synchronous>, transform_indices = @transform_1, window_bounds = array<i64: 1, 32>}, {pipeline_mode = #tpu.pipeline_mode<synchronous>, transform_indices = @transform_2, window_bounds = array<i64: 16, 32>}, {pipeline_mode = #tpu.pipeline_mode<synchronous>, transform_indices = @transform_3, window_bounds = array<i64: 32, 32>}, {pipeline_mode = #tpu.pipeline_mode<synchronous>, transform_indices = @transform_4, window_bounds = array<i64: 1, 32>}, {pipeline_mode = #tpu.pipeline_mode<synchronous>, transform_indices = @transform_5, window_bounds = array<i64: 32, 64>}, {pipeline_mode = #tpu.pipeline_mode<synchronous>, transform_indices = @transform_6, window_bounds = array<i64: 1, 64>}, {pipeline_mode = #tpu.pipeline_mode<synchronous>, transform_indices = @transform_7, window_bounds = array<i64: 32, 16>}, {pipeline_mode = #tpu.pipeline_mode<synchronous>, transform_indices = @transform_8, window_bounds = array<i64: 1, 16>}, {pipeline_mode = #tpu.pipeline_mode<synchronous>, transform_indices = @transform_9, window_bounds = array<i64: 32, 4>}, {pipeline_mode = #tpu.pipeline_mode<synchronous>, transform_indices = @transform_10, window_bounds = array<i64: 4, 32>}, {transform_indices = @transform_11, window_bounds = array<i64: 1, 2, 16>}]} {
    %c0 = arith.constant 0 : index
    %c0_0 = arith.constant 0 : index
    %c0_1 = arith.constant 0 : index
    %0 = vector.load %arg1[%c0, %c0_0, %c0_1] : memref<2x16x32xbf16, #tpu.memory_space<vmem>>, vector<2x16x32xbf16>
    %1 = arith.extf %0 : vector<2x16x32xbf16> to vector<2x16x32xf32>
    %cst = arith.constant dense<0.000000e+00> : vector<2x32xf32>
    %2 = vector.multi_reduction <add>, %1, %cst [1] : vector<2x16x32xf32> to vector<2x32xf32>
    %cst_2 = arith.constant 6.250000e-02 : f32
    %3 = vector.broadcast %cst_2 : f32 to vector<2x32xf32>
    %4 = arith.mulf %2, %3 : vector<2x32xf32>
    %c0_3 = arith.constant 0 : index
    %c0_4 = arith.constant 0 : index
    %5 = vector.load %arg2[%c0_3, %c0_4] : memref<1x32xbf16, #tpu.memory_space<vmem>>, vector<1x32xbf16>
    %6 = arith.extf %5 : vector<1x32xbf16> to vector<1x32xf32>
    %7 = vector.broadcast %6 : vector<1x32xf32> to vector<2x32xf32>
    %8 = arith.addf %4, %7 : vector<2x32xf32>
    %9 = arith.truncf %8 : vector<2x32xf32> to vector<2x32xbf16>
    %c0_5 = arith.constant 0 : index
    %c0_6 = arith.constant 0 : index
    %10 = vector.load %arg3[%c0_5, %c0_6] : memref<16x32xbf16, #tpu.memory_space<vmem>>, vector<16x32xbf16>
    %11 = vector.shape_cast %10 : vector<16x32xbf16> to vector<1x16x32xbf16>
    %12 = vector.broadcast %11 : vector<1x16x32xbf16> to vector<2x16x32xbf16>
    %13 = arith.addf %0, %12 : vector<2x16x32xbf16>
    %14 = vector.shape_cast %13 : vector<2x16x32xbf16> to vector<32x32xbf16>
    %c0_7 = arith.constant 0 : index
    %c0_8 = arith.constant 0 : index
    %15 = vector.load %arg4[%c0_7, %c0_8] : memref<32x32xbf16, #tpu.memory_space<vmem>>, vector<32x32xbf16>
    %cst_9 = arith.constant dense<0.000000e+00> : vector<2x32xf32>
    %16 = tpu.matmul %9, %15, %cst_9 {dimension_numbers = #tpu.dot_dimension_numbers<[1], [0], [0], [1], [0, 0, 1, 1], [], []>} : vector<2x32xbf16>, vector<32x32xbf16>, vector<2x32xf32> -> vector<2x32xf32>
    %c0_10 = arith.constant 0 : index
    %c0_11 = arith.constant 0 : index
    %17 = vector.load %arg5[%c0_10, %c0_11] : memref<1x32xf32, #tpu.memory_space<vmem>>, vector<1x32xf32>
    %18 = vector.broadcast %17 : vector<1x32xf32> to vector<2x32xf32>
    %19 = arith.addf %16, %18 : vector<2x32xf32>
    %c0_12 = arith.constant 0 : index
    %c0_13 = arith.constant 0 : index
    %20 = vector.load %arg6[%c0_12, %c0_13] : memref<32x64xbf16, #tpu.memory_space<vmem>>, vector<32x64xbf16>
    %cst_14 = arith.constant dense<0.000000e+00> : vector<2x64xf32>
    %21 = tpu.matmul %9, %20, %cst_14 {dimension_numbers = #tpu.dot_dimension_numbers<[1], [0], [0], [1], [0, 0, 1, 1], [], []>} : vector<2x32xbf16>, vector<32x64xbf16>, vector<2x64xf32> -> vector<2x64xf32>
    %c0_15 = arith.constant 0 : index
    %c0_16 = arith.constant 0 : index
    %22 = vector.load %arg7[%c0_15, %c0_16] : memref<1x64xf32, #tpu.memory_space<vmem>>, vector<1x64xf32>
    %23 = vector.broadcast %22 : vector<1x64xf32> to vector<2x64xf32>
    %24 = arith.addf %21, %23 : vector<2x64xf32>
    %c0_17 = arith.constant 0 : index
    %c0_18 = arith.constant 0 : index
    %25 = vector.load %arg6[%c0_17, %c0_18] : memref<32x64xbf16, #tpu.memory_space<vmem>>, vector<32x64xbf16>
    %cst_19 = arith.constant dense<0.000000e+00> : vector<32x64xf32>
    %26 = tpu.matmul %14, %25, %cst_19 {dimension_numbers = #tpu.dot_dimension_numbers<[1], [0], [0], [1], [0, 0, 1, 1], [], []>} : vector<32x32xbf16>, vector<32x64xbf16>, vector<32x64xf32> -> vector<32x64xf32>
    %c0_20 = arith.constant 0 : index
    %c0_21 = arith.constant 0 : index
    %27 = vector.load %arg7[%c0_20, %c0_21] : memref<1x64xf32, #tpu.memory_space<vmem>>, vector<1x64xf32>
    %28 = vector.broadcast %27 : vector<1x64xf32> to vector<32x64xf32>
    %29 = arith.addf %26, %28 : vector<32x64xf32>
    %30 = vector.extract_strided_slice %24 {offsets = [0, 0], sizes = [2, 32], strides = [1, 1]} : vector<2x64xf32> to vector<2x32xf32>
    %31 = vector.extract_strided_slice %24 {offsets = [0, 32], sizes = [2, 32], strides = [1, 1]} : vector<2x64xf32> to vector<2x32xf32>
    %32 = vector.extract_strided_slice %29 {offsets = [0, 0], sizes = [32, 32], strides = [1, 1]} : vector<32x64xf32> to vector<32x32xf32>
    %33 = vector.shape_cast %32 : vector<32x32xf32> to vector<2x16x32xf32>
    %34 = vector.extract_strided_slice %29 {offsets = [0, 32], sizes = [32, 32], strides = [1, 1]} : vector<32x64xf32> to vector<32x32xf32>
    %35 = vector.shape_cast %34 : vector<32x32xf32> to vector<2x16x32xf32>
    %c0_22 = arith.constant 0 : index
    %c0_23 = arith.constant 0 : index
    %36 = vector.load %arg10[%c0_22, %c0_23] : memref<32x4xf32, #tpu.memory_space<vmem>>, vector<32x4xf32>
    %37 = arith.mulf %30, %19 : vector<2x32xf32>
    %cst_24 = arith.constant dense<0.000000e+00> : vector<2x4xf32>
    %38 = tpu.matmul %37, %36, %cst_24 {dimension_numbers = #tpu.dot_dimension_numbers<[1], [0], [0], [1], [0, 0, 1, 1], [], []>} : vector<2x32xf32>, vector<32x4xf32>, vector<2x4xf32> -> vector<2x4xf32>
    %39 = vector.shape_cast %19 : vector<2x32xf32> to vector<2x1x32xf32>
    %40 = vector.broadcast %39 : vector<2x1x32xf32> to vector<2x16x32xf32>
    %41 = arith.mulf %33, %40 : vector<2x16x32xf32>
    %42 = vector.shape_cast %41 : vector<2x16x32xf32> to vector<32x32xf32>
    %cst_25 = arith.constant dense<0.000000e+00> : vector<32x4xf32>
    %43 = tpu.matmul %42, %36, %cst_25 {dimension_numbers = #tpu.dot_dimension_numbers<[1], [0], [0], [1], [0, 0, 1, 1], [], []>} : vector<32x32xf32>, vector<32x4xf32>, vector<32x4xf32> -> vector<32x4xf32>
    %44 = vector.shape_cast %43 : vector<32x4xf32> to vector<2x16x4xf32>
    %cst_26 = arith.constant dense<0xFF800000> : vector<2x4xf32>
    %45 = vector.multi_reduction <maximumf>, %44, %cst_26 [1] : vector<2x16x4xf32> to vector<2x4xf32>
    %46 = arith.maximumf %45, %38 : vector<2x4xf32>
    %47 = arith.subf %38, %46 : vector<2x4xf32>
    %48 = math.exp %47 : vector<2x4xf32>
    %49 = vector.shape_cast %46 : vector<2x4xf32> to vector<2x1x4xf32>
    %50 = vector.broadcast %49 : vector<2x1x4xf32> to vector<2x16x4xf32>
    %51 = arith.subf %44, %50 : vector<2x16x4xf32>
    %52 = math.exp %51 : vector<2x16x4xf32>
    %cst_27 = arith.constant dense<0.000000e+00> : vector<2x4xf32>
    %53 = vector.multi_reduction <add>, %52, %cst_27 [1] : vector<2x16x4xf32> to vector<2x4xf32>
    %54 = arith.addf %53, %48 : vector<2x4xf32>
    %55 = tpu.reciprocal %54 {approx = true} : vector<2x4xf32> -> vector<2x4xf32>
    %56 = arith.mulf %48, %55 : vector<2x4xf32>
    %57 = vector.shape_cast %55 : vector<2x4xf32> to vector<2x1x4xf32>
    %58 = vector.broadcast %57 : vector<2x1x4xf32> to vector<2x16x4xf32>
    %59 = arith.mulf %52, %58 : vector<2x16x4xf32>
    %c0_28 = arith.constant 0 : index
    %c0_29 = arith.constant 0 : index
    %60 = vector.load %arg11[%c0_28, %c0_29] : memref<4x32xf32, #tpu.memory_space<vmem>>, vector<4x32xf32>
    %cst_30 = arith.constant dense<0.000000e+00> : vector<2x32xf32>
    %61 = tpu.matmul %56, %60, %cst_30 {dimension_numbers = #tpu.dot_dimension_numbers<[1], [0], [0], [1], [0, 0, 1, 1], [], []>} : vector<2x4xf32>, vector<4x32xf32>, vector<2x32xf32> -> vector<2x32xf32>
    %62 = vector.shape_cast %59 : vector<2x16x4xf32> to vector<32x4xf32>
    %cst_31 = arith.constant dense<0.000000e+00> : vector<32x32xf32>
    %63 = tpu.matmul %62, %60, %cst_31 {dimension_numbers = #tpu.dot_dimension_numbers<[1], [0], [0], [1], [0, 0, 1, 1], [], []>} : vector<32x4xf32>, vector<4x32xf32>, vector<32x32xf32> -> vector<32x32xf32>
    %64 = vector.shape_cast %63 : vector<32x32xf32> to vector<2x16x32xf32>
    %65 = arith.mulf %61, %31 : vector<2x32xf32>
    %66 = arith.mulf %64, %35 : vector<2x16x32xf32>
    %cst_32 = arith.constant dense<0.000000e+00> : vector<2x32xf32>
    %67 = vector.multi_reduction <add>, %66, %cst_32 [1] : vector<2x16x32xf32> to vector<2x32xf32>
    %68 = arith.addf %65, %67 : vector<2x32xf32>
    %69 = arith.truncf %68 : vector<2x32xf32> to vector<2x32xbf16>
    %c0_33 = arith.constant 0 : index
    %c0_34 = arith.constant 0 : index
    %70 = vector.load %arg8[%c0_33, %c0_34] : memref<32x16xbf16, #tpu.memory_space<vmem>>, vector<32x16xbf16>
    %cst_35 = arith.constant dense<0.000000e+00> : vector<2x16xf32>
    %71 = tpu.matmul %69, %70, %cst_35 {dimension_numbers = #tpu.dot_dimension_numbers<[1], [0], [0], [1], [0, 0, 1, 1], [], []>} : vector<2x32xbf16>, vector<32x16xbf16>, vector<2x16xf32> -> vector<2x16xf32>
    %c0_36 = arith.constant 0 : index
    %c0_37 = arith.constant 0 : index
    %72 = vector.load %arg9[%c0_36, %c0_37] : memref<1x16xf32, #tpu.memory_space<vmem>>, vector<1x16xf32>
    %73 = vector.broadcast %72 : vector<1x16xf32> to vector<2x16xf32>
    %74 = arith.addf %71, %73 : vector<2x16xf32>
    %c0_38 = arith.constant 0 : index
    %c0_39 = arith.constant 0 : index
    %c0_40 = arith.constant 0 : index
    %75 = vector.load %arg12[%c0_38, %c0_39, %c0_40] : memref<1x2x16xf32, #tpu.memory_space<vmem>>, vector<1x2x16xf32>
    %76 = vector.shape_cast %75 : vector<1x2x16xf32> to vector<2x16xf32>
    %77 = vector.shape_cast %74 : vector<2x16xf32> to vector<1x2x16xf32>
    tpu.vector_store %arg12[%c0_38, %c0_39, %c0_40], %77 {strides = array<i32>} : memref<1x2x16xf32, #tpu.memory_space<vmem>>, vector<1x2x16xf32>,
    return
  }
  func.func @transform_0(%arg0: i32) -> (i32, i32, i32) {
    %c0_i32 = arith.constant 0 : i32
    %c0_i32_0 = arith.constant 0 : i32
    %c0_i32_1 = arith.constant 0 : i32
    return %arg0, %c0_i32, %c0_i32_0 : i32, i32, i32
  }
  func.func @transform_1(%arg0: i32) -> (i32, i32) {
    %c0_i32 = arith.constant 0 : i32
    %c0_i32_0 = arith.constant 0 : i32
    %c0_i32_1 = arith.constant 0 : i32
    return %c0_i32, %c0_i32_0 : i32, i32
  }
  func.func @transform_2(%arg0: i32) -> (i32, i32) {
    %c0_i32 = arith.constant 0 : i32
    %c0_i32_0 = arith.constant 0 : i32
    %c0_i32_1 = arith.constant 0 : i32
    return %c0_i32, %c0_i32_0 : i32, i32
  }
  func.func @transform_3(%arg0: i32) -> (i32, i32) {
    %c0_i32 = arith.constant 0 : i32
    %c0_i32_0 = arith.constant 0 : i32
    %c0_i32_1 = arith.constant 0 : i32
    return %c0_i32, %c0_i32_0 : i32, i32
  }
  func.func @transform_4(%arg0: i32) -> (i32, i32) {
    %c0_i32 = arith.constant 0 : i32
    %c0_i32_0 = arith.constant 0 : i32
    %c0_i32_1 = arith.constant 0 : i32
    return %c0_i32, %c0_i32_0 : i32, i32
  }
  func.func @transform_5(%arg0: i32) -> (i32, i32) {
    %c0_i32 = arith.constant 0 : i32
    %c0_i32_0 = arith.constant 0 : i32
    %c0_i32_1 = arith.constant 0 : i32
    return %c0_i32, %c0_i32_0 : i32, i32
  }
  func.func @transform_6(%arg0: i32) -> (i32, i32) {
    %c0_i32 = arith.constant 0 : i32
    %c0_i32_0 = arith.constant 0 : i32
    %c0_i32_1 = arith.constant 0 : i32
    return %c0_i32, %c0_i32_0 : i32, i32
  }
  func.func @transform_7(%arg0: i32) -> (i32, i32) {
    %c0_i32 = arith.constant 0 : i32
    %c0_i32_0 = arith.constant 0 : i32
    %c0_i32_1 = arith.constant 0 : i32
    return %c0_i32, %c0_i32_0 : i32, i32
  }
  func.func @transform_8(%arg0: i32) -> (i32, i32) {
    %c0_i32 = arith.constant 0 : i32
    %c0_i32_0 = arith.constant 0 : i32
    %c0_i32_1 = arith.constant 0 : i32
    return %c0_i32, %c0_i32_0 : i32, i32
  }
  func.func @transform_9(%arg0: i32) -> (i32, i32) {
    %c0_i32 = arith.constant 0 : i32
    %c0_i32_0 = arith.constant 0 : i32
    %c0_i32_1 = arith.constant 0 : i32
    return %c0_i32, %c0_i32_0 : i32, i32
  }
  func.func @transform_10(%arg0: i32) -> (i32, i32) {
    %c0_i32 = arith.constant 0 : i32
    %c0_i32_0 = arith.constant 0 : i32
    %c0_i32_1 = arith.constant 0 : i32
    return %c0_i32, %c0_i32_0 : i32, i32
  }
  func.func @transform_11(%arg0: i32) -> (i32, i32, i32) {
    %c0_i32 = arith.constant 0 : i32
    %c0_i32_0 = arith.constant 0 : i32
    %c0_i32_1 = arith.constant 0 : i32
    return %arg0, %c0_i32, %c0_i32_0 : i32, i32, i32
  }
}

module attributes {stable_mosaic.version = 11 : i64} {
  func.func @_attnpool_kernel(%arg0: i32, %arg1: memref<2x16x32xbf16, #tpu.memory_space<vmem>>, %arg2: memref<1x32xbf16, #tpu.memory_space<vmem>>, %arg3: memref<16x32xbf16, #tpu.memory_space<vmem>>, %arg4: memref<32x32xbf16, #tpu.memory_space<vmem>>, %arg5: memref<1x32xf32, #tpu.memory_space<vmem>>, %arg6: memref<32x64xbf16, #tpu.memory_space<vmem>>, %arg7: memref<1x64xf32, #tpu.memory_space<vmem>>, %arg8: memref<32x16xbf16, #tpu.memory_space<vmem>>, %arg9: memref<1x16xf32, #tpu.memory_space<vmem>>, %arg10: memref<32x4xf32, #tpu.memory_space<vmem>>, %arg11: memref<4x32xf32, #tpu.memory_space<vmem>>, %arg12: memref<1x2x16xf32, #tpu.memory_space<vmem>>) attributes {dimension_semantics = [#tpu.dimension_semantics<parallel>], iteration_bounds = array<i64: 2>, scalar_prefetch = 0 : i64, scratch_operands = 0 : i64, tpu.core_type = #tpu.core_type<tc>, window_params = [{transform_indices = @transform_0, window_bounds = array<i64: 2, 16, 32>}, {pipeline_mode = #tpu.pipeline_mode<synchronous>, transform_indices = @transform_1, window_bounds = array<i64: 1, 32>}, {pipeline_mode = #tpu.pipeline_mode<synchronous>, transform_indices = @transform_2, window_bounds = array<i64: 16, 32>}, {pipeline_mode = #tpu.pipeline_mode<synchronous>, transform_indices = @transform_3, window_bounds = array<i64: 32, 32>}, {pipeline_mode = #tpu.pipeline_mode<synchronous>, transform_indices = @transform_4, window_bounds = array<i64: 1, 32>}, {pipeline_mode = #tpu.pipeline_mode<synchronous>, transform_indices = @transform_5, window_bounds = array<i64: 32, 64>}, {pipeline_mode = #tpu.pipeline_mode<synchronous>, transform_indices = @transform_6, window_bounds = array<i64: 1, 64>}, {pipeline_mode = #tpu.pipeline_mode<synchronous>, transform_indices = @transform_7, window_bounds = array<i64: 32, 16>}, {pipeline_mode = #tpu.pipeline_mode<synchronous>, transform_indices = @transform_8, window_bounds = array<i64: 1, 16>}, {pipeline_mode = #tpu.pipeline_mode<synchronous>, transform_indices = @transform_9, window_bounds = array<i64: 32, 4>}, {pipeline_mode = #tpu.pipeline_mode<synchronous>, transform_indices = @transform_10, window_bounds = array<i64: 4, 32>}, {transform_indices = @transform_11, window_bounds = array<i64: 1, 2, 16>}]} {
    %c0 = arith.constant 0 : index
    %c0_0 = arith.constant 0 : index
    %c0_1 = arith.constant 0 : index
    %0 = vector.load %arg1[%c0, %c0_0, %c0_1] : memref<2x16x32xbf16, #tpu.memory_space<vmem>>, vector<2x16x32xbf16>
    %1 = arith.extf %0 : vector<2x16x32xbf16> to vector<2x16x32xf32>
    %cst = arith.constant dense<0.000000e+00> : vector<2x32xf32>
    %2 = vector.multi_reduction <add>, %1, %cst [1] : vector<2x16x32xf32> to vector<2x32xf32>
    %cst_2 = arith.constant 6.250000e-02 : f32
    %3 = vector.broadcast %cst_2 : f32 to vector<2x32xf32>
    %4 = arith.mulf %2, %3 : vector<2x32xf32>
    %c0_3 = arith.constant 0 : index
    %c0_4 = arith.constant 0 : index
    %5 = vector.load %arg2[%c0_3, %c0_4] : memref<1x32xbf16, #tpu.memory_space<vmem>>, vector<1x32xbf16>
    %6 = arith.extf %5 : vector<1x32xbf16> to vector<1x32xf32>
    %7 = vector.broadcast %6 : vector<1x32xf32> to vector<2x32xf32>
    %8 = arith.addf %4, %7 : vector<2x32xf32>
    %9 = arith.truncf %8 : vector<2x32xf32> to vector<2x32xbf16>
    %c0_5 = arith.constant 0 : index
    %c0_6 = arith.constant 0 : index
    %10 = vector.load %arg3[%c0_5, %c0_6] : memref<16x32xbf16, #tpu.memory_space<vmem>>, vector<16x32xbf16>
    %11 = vector.shape_cast %10 : vector<16x32xbf16> to vector<1x16x32xbf16>
    %12 = vector.broadcast %11 : vector<1x16x32xbf16> to vector<2x16x32xbf16>
    %13 = arith.addf %0, %12 : vector<2x16x32xbf16>
    %14 = vector.shape_cast %13 : vector<2x16x32xbf16> to vector<32x32xbf16>
    %c0_7 = arith.constant 0 : index
    %c0_8 = arith.constant 0 : index
    %15 = vector.load %arg4[%c0_7, %c0_8] : memref<32x32xbf16, #tpu.memory_space<vmem>>, vector<32x32xbf16>
    %cst_9 = arith.constant dense<0.000000e+00> : vector<2x32xf32>
    %16 = tpu.matmul %9, %15, %cst_9 {dimension_numbers = #tpu.dot_dimension_numbers<[1], [0], [0], [1], [0, 0, 1, 1], [], []>} : vector<2x32xbf16>, vector<32x32xbf16>, vector<2x32xf32> -> vector<2x32xf32>
    %c0_10 = arith.constant 0 : index
    %c0_11 = arith.constant 0 : index
    %17 = vector.load %arg5[%c0_10, %c0_11] : memref<1x32xf32, #tpu.memory_space<vmem>>, vector<1x32xf32>
    %18 = vector.broadcast %17 : vector<1x32xf32> to vector<2x32xf32>
    %19 = arith.addf %16, %18 : vector<2x32xf32>
    %c0_12 = arith.constant 0 : index
    %c0_13 = arith.constant 0 : index
    %20 = vector.load %arg6[%c0_12, %c0_13] : memref<32x64xbf16, #tpu.memory_space<vmem>>, vector<32x64xbf16>
    %cst_14 = arith.constant dense<0.000000e+00> : vector<2x64xf32>
    %21 = tpu.matmul %9, %20, %cst_14 {dimension_numbers = #tpu.dot_dimension_numbers<[1], [0], [0], [1], [0, 0, 1, 1], [], []>} : vector<2x32xbf16>, vector<32x64xbf16>, vector<2x64xf32> -> vector<2x64xf32>
    %c0_15 = arith.constant 0 : index
    %c0_16 = arith.constant 0 : index
    %22 = vector.load %arg7[%c0_15, %c0_16] : memref<1x64xf32, #tpu.memory_space<vmem>>, vector<1x64xf32>
    %23 = vector.broadcast %22 : vector<1x64xf32> to vector<2x64xf32>
    %24 = arith.addf %21, %23 : vector<2x64xf32>
    %c0_17 = arith.constant 0 : index
    %c0_18 = arith.constant 0 : index
    %25 = vector.load %arg6[%c0_17, %c0_18] : memref<32x64xbf16, #tpu.memory_space<vmem>>, vector<32x64xbf16>
    %cst_19 = arith.constant dense<0.000000e+00> : vector<32x64xf32>
    %26 = tpu.matmul %14, %25, %cst_19 {dimension_numbers = #tpu.dot_dimension_numbers<[1], [0], [0], [1], [0, 0, 1, 1], [], []>} : vector<32x32xbf16>, vector<32x64xbf16>, vector<32x64xf32> -> vector<32x64xf32>
    %c0_20 = arith.constant 0 : index
    %c0_21 = arith.constant 0 : index
    %27 = vector.load %arg7[%c0_20, %c0_21] : memref<1x64xf32, #tpu.memory_space<vmem>>, vector<1x64xf32>
    %28 = vector.broadcast %27 : vector<1x64xf32> to vector<32x64xf32>
    %29 = arith.addf %26, %28 : vector<32x64xf32>
    %30 = vector.extract_strided_slice %24 {offsets = [0, 0], sizes = [2, 32], strides = [1, 1]} : vector<2x64xf32> to vector<2x32xf32>
    %31 = vector.extract_strided_slice %24 {offsets = [0, 32], sizes = [2, 32], strides = [1, 1]} : vector<2x64xf32> to vector<2x32xf32>
    %32 = vector.extract_strided_slice %29 {offsets = [0, 0], sizes = [32, 32], strides = [1, 1]} : vector<32x64xf32> to vector<32x32xf32>
    %33 = vector.shape_cast %32 : vector<32x32xf32> to vector<2x16x32xf32>
    %34 = vector.extract_strided_slice %29 {offsets = [0, 32], sizes = [32, 32], strides = [1, 1]} : vector<32x64xf32> to vector<32x32xf32>
    %35 = vector.shape_cast %34 : vector<32x32xf32> to vector<2x16x32xf32>
    %c0_22 = arith.constant 0 : index
    %c0_23 = arith.constant 0 : index
    %36 = vector.load %arg10[%c0_22, %c0_23] : memref<32x4xf32, #tpu.memory_space<vmem>>, vector<32x4xf32>
    %37 = arith.mulf %30, %19 : vector<2x32xf32>
    %cst_24 = arith.constant dense<0.000000e+00> : vector<2x4xf32>
    %38 = tpu.matmul %37, %36, %cst_24 {dimension_numbers = #tpu.dot_dimension_numbers<[1], [0], [0], [1], [0, 0, 1, 1], [], []>} : vector<2x32xf32>, vector<32x4xf32>, vector<2x4xf32> -> vector<2x4xf32>
    %39 = vector.shape_cast %19 : vector<2x32xf32> to vector<2x1x32xf32>
    %40 = vector.broadcast %39 : vector<2x1x32xf32> to vector<2x16x32xf32>
    %41 = arith.mulf %33, %40 : vector<2x16x32xf32>
    %42 = vector.shape_cast %41 : vector<2x16x32xf32> to vector<32x32xf32>
    %cst_25 = arith.constant dense<0.000000e+00> : vector<32x4xf32>
    %43 = tpu.matmul %42, %36, %cst_25 {dimension_numbers = #tpu.dot_dimension_numbers<[1], [0], [0], [1], [0, 0, 1, 1], [], []>} : vector<32x32xf32>, vector<32x4xf32>, vector<32x4xf32> -> vector<32x4xf32>
    %44 = vector.shape_cast %43 : vector<32x4xf32> to vector<2x16x4xf32>
    %cst_26 = arith.constant dense<0xFF800000> : vector<2x4xf32>
    %45 = vector.multi_reduction <maximumf>, %44, %cst_26 [1] : vector<2x16x4xf32> to vector<2x4xf32>
    %46 = arith.maximumf %45, %38 : vector<2x4xf32>
    %47 = arith.subf %38, %46 : vector<2x4xf32>
    %48 = math.exp %47 : vector<2x4xf32>
    %49 = vector.shape_cast %46 : vector<2x4xf32> to vector<2x1x4xf32>
    %50 = vector.broadcast %49 : vector<2x1x4xf32> to vector<2x16x4xf32>
    %51 = arith.subf %44, %50 : vector<2x16x4xf32>
    %52 = math.exp %51 : vector<2x16x4xf32>
    %cst_27 = arith.constant dense<0.000000e+00> : vector<2x4xf32>
    %53 = vector.multi_reduction <add>, %52, %cst_27 [1] : vector<2x16x4xf32> to vector<2x4xf32>
    %54 = arith.addf %53, %48 : vector<2x4xf32>
    %55 = tpu.reciprocal %54 {approx = true} : vector<2x4xf32> -> vector<2x4xf32>
    %56 = arith.mulf %48, %55 : vector<2x4xf32>
    %57 = vector.shape_cast %55 : vector<2x4xf32> to vector<2x1x4xf32>
    %58 = vector.broadcast %57 : vector<2x1x4xf32> to vector<2x16x4xf32>
    %59 = arith.mulf %52, %58 : vector<2x16x4xf32>
    %c0_28 = arith.constant 0 : index
    %c0_29 = arith.constant 0 : index
    %60 = vector.load %arg11[%c0_28, %c0_29] : memref<4x32xf32, #tpu.memory_space<vmem>>, vector<4x32xf32>
    %cst_30 = arith.constant dense<0.000000e+00> : vector<2x32xf32>
    %61 = tpu.matmul %56, %60, %cst_30 {dimension_numbers = #tpu.dot_dimension_numbers<[1], [0], [0], [1], [0, 0, 1, 1], [], []>} : vector<2x4xf32>, vector<4x32xf32>, vector<2x32xf32> -> vector<2x32xf32>
    %62 = vector.shape_cast %59 : vector<2x16x4xf32> to vector<32x4xf32>
    %cst_31 = arith.constant dense<0.000000e+00> : vector<32x32xf32>
    %63 = tpu.matmul %62, %60, %cst_31 {dimension_numbers = #tpu.dot_dimension_numbers<[1], [0], [0], [1], [0, 0, 1, 1], [], []>} : vector<32x4xf32>, vector<4x32xf32>, vector<32x32xf32> -> vector<32x32xf32>
    %64 = vector.shape_cast %63 : vector<32x32xf32> to vector<2x16x32xf32>
    %65 = arith.mulf %61, %31 : vector<2x32xf32>
    %66 = arith.mulf %64, %35 : vector<2x16x32xf32>
    %cst_32 = arith.constant dense<0.000000e+00> : vector<2x32xf32>
    %67 = vector.multi_reduction <add>, %66, %cst_32 [1] : vector<2x16x32xf32> to vector<2x32xf32>
    %68 = arith.addf %65, %67 : vector<2x32xf32>
    %69 = arith.truncf %68 : vector<2x32xf32> to vector<2x32xbf16>
    %c0_33 = arith.constant 0 : index
    %c0_34 = arith.constant 0 : index
    %70 = vector.load %arg8[%c0_33, %c0_34] : memref<32x16xbf16, #tpu.memory_space<vmem>>, vector<32x16xbf16>
    %cst_35 = arith.constant dense<0.000000e+00> : vector<2x16xf32>
    %71 = tpu.matmul %69, %70, %cst_35 {dimension_numbers = #tpu.dot_dimension_numbers<[1], [0], [0], [1], [0, 0, 1, 1], [], []>} : vector<2x32xbf16>, vector<32x16xbf16>, vector<2x16xf32> -> vector<2x16xf32>
    %c0_36 = arith.constant 0 : index
    %c0_37 = arith.constant 0 : index
    %72 = vector.load %arg9[%c0_36, %c0_37] : memref<1x16xf32, #tpu.memory_space<vmem>>, vector<1x16xf32>
    %73 = vector.broadcast %72 : vector<1x16xf32> to vector<2x16xf32>
    %74 = arith.addf %71, %73 : vector<2x16xf32>
    %c0_38 = arith.constant 0 : index
    %c0_39 = arith.constant 0 : index
    %c0_40 = arith.constant 0 : index
    %75 = vector.load %arg12[%c0_38, %c0_39, %c0_40] : memref<1x2x16xf32, #tpu.memory_space<vmem>>, vector<1x2x16xf32>
    %76 = vector.shape_cast %75 : vector<1x2x16xf32> to vector<2x16xf32>
    %77 = vector.shape_cast %74 : vector<2x16xf32> to vector<1x2x16xf32>
    tpu.vector_store %arg12[%c0_38, %c0_39, %c0_40], %77 {strides = array<i32>} : memref<1x2x16xf32, #tpu.memory_space<vmem>>, vector<1x2x16xf32>,
    return
  }
  func.func @transform_0(%arg0: i32) -> (i32, i32, i32) {
    %c0_i32 = arith.constant 0 : i32
    %c0_i32_0 = arith.constant 0 : i32
    %c0_i32_1 = arith.constant 0 : i32
    return %arg0, %c0_i32, %c0_i32_0 : i32, i32, i32
  }
  func.func @transform_1(%arg0: i32) -> (i32, i32) {
    %c0_i32 = arith.constant 0 : i32
    %c0_i32_0 = arith.constant 0 : i32
    %c0_i32_1 = arith.constant 0 : i32
    return %c0_i32, %c0_i32_0 : i32, i32
  }
  func.func @transform_2(%arg0: i32) -> (i32, i32) {
    %c0_i32 = arith.constant 0 : i32
    %c0_i32_0 = arith.constant 0 : i32
    %c0_i32_1 = arith.constant 0 : i32
    return %c0_i32, %c0_i32_0 : i32, i32
  }
  func.func @transform_3(%arg0: i32) -> (i32, i32) {
    %c0_i32 = arith.constant 0 : i32
    %c0_i32_0 = arith.constant 0 : i32
    %c0_i32_1 = arith.constant 0 : i32
    return %c0_i32, %c0_i32_0 : i32, i32
  }
  func.func @transform_4(%arg0: i32) -> (i32, i32) {
    %c0_i32 = arith.constant 0 : i32
    %c0_i32_0 = arith.constant 0 : i32
    %c0_i32_1 = arith.constant 0 : i32
    return %c0_i32, %c0_i32_0 : i32, i32
  }
  func.func @transform_5(%arg0: i32) -> (i32, i32) {
    %c0_i32 = arith.constant 0 : i32
    %c0_i32_0 = arith.constant 0 : i32
    %c0_i32_1 = arith.constant 0 : i32
    return %c0_i32, %c0_i32_0 : i32, i32
  }
  func.func @transform_6(%arg0: i32) -> (i32, i32) {
    %c0_i32 = arith.constant 0 : i32
    %c0_i32_0 = arith.constant 0 : i32
    %c0_i32_1 = arith.constant 0 : i32
    return %c0_i32, %c0_i32_0 : i32, i32
  }
  func.func @transform_7(%arg0: i32) -> (i32, i32) {
    %c0_i32 = arith.constant 0 : i32
    %c0_i32_0 = arith.constant 0 : i32
    %c0_i32_1 = arith.constant 0 : i32
    return %c0_i32, %c0_i32_0 : i32, i32
  }
  func.func @transform_8(%arg0: i32) -> (i32, i32) {
    %c0_i32 = arith.constant 0 : i32
    %c0_i32_0 = arith.constant 0 : i32
    %c0_i32_1 = arith.constant 0 : i32
    return %c0_i32, %c0_i32_0 : i32, i32
  }
  func.func @transform_9(%arg0: i32) -> (i32, i32) {
    %c0_i32 = arith.constant 0 : i32
    %c0_i32_0 = arith.constant 0 : i32
    %c0_i32_1 = arith.constant 0 : i32
    return %c0_i32, %c0_i32_0 : i32, i32
  }
  func.func @transform_10(%arg0: i32) -> (i32, i32) {
    %c0_i32 = arith.constant 0 : i32
    %c0_i32_0 = arith.constant 0 : i32
    %c0_i32_1 = arith.constant 0 : i32
    return %c0_i32, %c0_i32_0 : i32, i32
  }
  func.func @transform_11(%arg0: i32) -> (i32, i32, i32) {
    %c0_i32 = arith.constant 0 : i32
    %c0_i32_0 = arith.constant 0 : i32
    %c0_i32_1 = arith.constant 0 : i32
    return %arg0, %c0_i32, %c0_i32_0 : i32, i32, i32
  }
}

</mosaic_0001>

<llo_original>
// kernel: attention_pool_2d.1
$region0: #{attention_pool_2d.1}
  #allocation0 [shape = 'u32[]', space=smem, size = 0x4, offset = 0x4, fixed_abs, tag = 'smem constant byte address 0x4 - core index']
  #allocation1 [shape = 'u32[144,128]{1,0:T(1,128)}', space=vmem, size = 0x12000, scoped, tag = 'internal scratch']
  %s0 = inlined_call_operand.vmem [shape: bf16[4,16,32], index: 0, kind: input, shape index: {}]
  %s1 = inlined_call_operand.vmem [shape: bf16[1,32], index: 1, kind: input, shape index: {}]
  %s2 = inlined_call_operand.vmem [shape: bf16[16,32], index: 2, kind: input, shape index: {}]
  %s3 = inlined_call_operand.vmem [shape: bf16[32,32], index: 3, kind: input, shape index: {}]
  %s4 = inlined_call_operand.vmem [shape: f32[1,32], index: 4, kind: input, shape index: {}]
  %s5 = inlined_call_operand.vmem [shape: bf16[32,64], index: 5, kind: input, shape index: {}]
  %s6 = inlined_call_operand.vmem [shape: f32[1,64], index: 6, kind: input, shape index: {}]
  %s7 = inlined_call_operand.vmem [shape: bf16[32,16], index: 7, kind: input, shape index: {}]
  %s8 = inlined_call_operand.vmem [shape: f32[1,16], index: 8, kind: input, shape index: {}]
  %s9 = inlined_call_operand.vmem [shape: f32[32,4], index: 9, kind: input, shape index: {}]
  %s10 = inlined_call_operand.vmem [shape: f32[4,32], index: 10, kind: input, shape index: {}]
  %s11 = inlined_call_operand.hbm [shape: f32[2,2,16], index: 11, kind: output, shape index: {}]
  %s12 = sld [smem:[#allocation0]]
  $region77: #{attention_pool_2d.1} parent=0
    _
  %s14 = ssub.s32 1, %s12
  %s15 = scalar_select 0, %s14, %s12
  $region1: #{attention_pool_2d.1} parent=0
    #allocation2 [shape = 'u8[2048]{0}', space=vmem, size = 0x800, scoped, tag = 'output window, operand 0']
    #allocation3 [shape = 's32[2]{0}', space=sflag, size = 0x8, scoped, tag = 'scoped memory for attention_pool_2d.1']
    %16 = vsyncpa [#allocation3], 0
    %s17 = scalar_lea.sflag [#allocation3], 1
    %18 = vsyncpa %s17, 0
    loop: start=0, step=1, limit=4
    $region2: #{attention_pool_2d.1} parent=1 // loop_pre_header
      _
    $region3: #{attention_pool_2d.1} parent=1 // loop_header
      %s20 = sphi 0, %s24
      %p21 = scmp.ge.s32.totalorder %s20, 4
      %s30 = sphi 0, %s32
      %s33 = sphi 0, %s30
      %s34 = sphi 0, %s33
      %s50 = sphi 0, %s34
      %s54 = sphi 0, %s54
      %s56 = sphi 0, %s54
      %s57 = sphi 0, %s56
      %s71 = sphi 0, %s57
      %s75 = sphi 0, %s75
      %s77 = sphi 0, %s75
      %s78 = sphi 0, %s77
      %s92 = sphi 0, %s78
      %s96 = sphi 0, %s96
      %s98 = sphi 0, %s96
      %s99 = sphi 0, %s98
      %s113 = sphi 0, %s99
      %s117 = sphi 0, %s117
      %s119 = sphi 0, %s117
      %s120 = sphi 0, %s119
      %s134 = sphi 0, %s120
      %s138 = sphi 0, %s138
      %s140 = sphi 0, %s138
      %s141 = sphi 0, %s140
      %s155 = sphi 0, %s141
      %s159 = sphi 0, %s159
      %s161 = sphi 0, %s159
      %s162 = sphi 0, %s161
      %s176 = sphi 0, %s162
      %s180 = sphi 0, %s180
      %s182 = sphi 0, %s180
      %s183 = sphi 0, %s182
      %s197 = sphi 0, %s183
      %s201 = sphi 0, %s201
      %s203 = sphi 0, %s201
      %s204 = sphi 0, %s203
      %s218 = sphi 0, %s204
      %s222 = sphi 0, %s222
      %s224 = sphi 0, %s222
      %s225 = sphi 0, %s224
      %s239 = sphi 0, %s225
      %s243 = sphi 0, %s243
      %s245 = sphi 0, %s243
      %s246 = sphi 0, %s245
      %s260 = sphi 0, %s246
      %s266 = sphi 0, %s268
      %s269 = sphi 0, %s266
      %s270 = sphi 0, %s269
      %s286 = sphi 0, %s270
    $region4: #{attention_pool_2d.1} parent=1 // loop_header_branch
      %23 = sbr.rel (%p21) target = $region8
    $region5: #{attention_pool_2d.1} parent=1 // loop_body
      %s25 = ssub.s32 %s20, 1
      %s26 = ssub.s32 %s20, 2
      %s27 = sadd.s32 %s20, 1
      %s28 = ssub.s32 %s20, %s27
      %p29 = scmp.eq.s32.totalorder %s28, 0
      %s31 = sadd.s32 %s30, 1
      %s32 = scalar_select %p29, %s30, %s31
      %p35 = pneg %p29
      %p36 = scmp.eq.s32.totalorder %s20, 1
      %p37 = por %p35, %p36
      %p38 = scmp.ne.s32.totalorder %s30, %s33
      %p39 = scmp.eq.s32.totalorder %s20, 0
      %p40 = por %p38, %p39
      %p41 = scmp.ne.s32.totalorder %s30, %s33
      %p42 = scmp.eq.s32.totalorder %s25, 1
      %p43 = por %p41, %p42
      %p44 = scmp.ne.s32.totalorder %s33, %s34
      %p45 = scmp.eq.s32.totalorder %s25, 0
      %p46 = por %p44, %p45
      %p47 = scmp.ne.s32.totalorder %s33, %s34
      %p48 = scmp.eq.s32.totalorder %s26, 1
      %p49 = por %p47, %p48
      %p51 = scmp.ne.s32.totalorder %s34, %s50
      %p52 = scmp.eq.s32.totalorder %s26, 0
      %p53 = por %p51, %p52
      %s55 = sadd.s32 %s54, 1
      %p58 = scmp.eq.s32.totalorder %s20, 1
      %p59 = scmp.ne.s32.totalorder %s54, %s56
      %p60 = scmp.eq.s32.totalorder %s20, 0
      %p61 = por %p59, %p60
      %p62 = scmp.ne.s32.totalorder %s54, %s56
      %p63 = scmp.eq.s32.totalorder %s25, 1
      %p64 = por %p62, %p63
      %p65 = scmp.ne.s32.totalorder %s56, %s57
      %p66 = scmp.eq.s32.totalorder %s25, 0
      %p67 = por %p65, %p66
      %p68 = scmp.ne.s32.totalorder %s56, %s57
      %p69 = scmp.eq.s32.totalorder %s26, 1
      %p70 = por %p68, %p69
      %p72 = scmp.ne.s32.totalorder %s57, %s71
      %p73 = scmp.eq.s32.totalorder %s26, 0
      %p74 = por %p72, %p73
      %s76 = sadd.s32 %s75, 1
      %p79 = scmp.eq.s32.totalorder %s20, 1
      %p80 = scmp.ne.s32.totalorder %s75, %s77
      %p81 = scmp.eq.s32.totalorder %s20, 0
      %p82 = por %p80, %p81
      %p83 = scmp.ne.s32.totalorder %s75, %s77
      %p84 = scmp.eq.s32.totalorder %s25, 1
      %p85 = por %p83, %p84
      %p86 = scmp.ne.s32.totalorder %s77, %s78
      %p87 = scmp.eq.s32.totalorder %s25, 0
      %p88 = por %p86, %p87
      %p89 = scmp.ne.s32.totalorder %s77, %s78
      %p90 = scmp.eq.s32.totalorder %s26, 1
      %p91 = por %p89, %p90
      %p93 = scmp.ne.s32.totalorder %s78, %s92
      %p94 = scmp.eq.s32.totalorder %s26, 0
      %p95 = por %p93, %p94
      %s97 = sadd.s32 %s96, 1
      %p100 = scmp.eq.s32.totalorder %s20, 1
      %p101 = scmp.ne.s32.totalorder %s96, %s98
      %p102 = scmp.eq.s32.totalorder %s20, 0
      %p103 = por %p101, %p102
      %p104 = scmp.ne.s32.totalorder %s96, %s98
      %p105 = scmp.eq.s32.totalorder %s25, 1
      %p106 = por %p104, %p105
      %p107 = scmp.ne.s32.totalorder %s98, %s99
      %p108 = scmp.eq.s32.totalorder %s25, 0
      %p109 = por %p107, %p108
      %p110 = scmp.ne.s32.totalorder %s98, %s99
      %p111 = scmp.eq.s32.totalorder %s26, 1
      %p112 = por %p110, %p111
      %p114 = scmp.ne.s32.totalorder %s99, %s113
      %p115 = scmp.eq.s32.totalorder %s26, 0
      %p116 = por %p114, %p115
      %s118 = sadd.s32 %s117, 1
      %p121 = scmp.eq.s32.totalorder %s20, 1
      %p122 = scmp.ne.s32.totalorder %s117, %s119
      %p123 = scmp.eq.s32.totalorder %s20, 0
      %p124 = por %p122, %p123
      %p125 = scmp.ne.s32.totalorder %s117, %s119
      %p126 = scmp.eq.s32.totalorder %s25, 1
      %p127 = por %p125, %p126
      %p128 = scmp.ne.s32.totalorder %s119, %s120
      %p129 = scmp.eq.s32.totalorder %s25, 0
      %p130 = por %p128, %p129
      %p131 = scmp.ne.s32.totalorder %s119, %s120
      %p132 = scmp.eq.s32.totalorder %s26, 1
      %p133 = por %p131, %p132
      %p135 = scmp.ne.s32.totalorder %s120, %s134
      %p136 = scmp.eq.s32.totalorder %s26, 0
      %p137 = por %p135, %p136
      %s139 = sadd.s32 %s138, 1
      %p142 = scmp.eq.s32.totalorder %s20, 1
      %p143 = scmp.ne.s32.totalorder %s138, %s140
      %p144 = scmp.eq.s32.totalorder %s20, 0
      %p145 = por %p143, %p144
      %p146 = scmp.ne.s32.totalorder %s138, %s140
      %p147 = scmp.eq.s32.totalorder %s25, 1
      %p148 = por %p146, %p147
      %p149 = scmp.ne.s32.totalorder %s140, %s141
      %p150 = scmp.eq.s32.totalorder %s25, 0
      %p151 = por %p149, %p150
      %p152 = scmp.ne.s32.totalorder %s140, %s141
      %p153 = scmp.eq.s32.totalorder %s26, 1
      %p154 = por %p152, %p153
      %p156 = scmp.ne.s32.totalorder %s141, %s155
      %p157 = scmp.eq.s32.totalorder %s26, 0
      %p158 = por %p156, %p157
      %s160 = sadd.s32 %s159, 1
      %p163 = scmp.eq.s32.totalorder %s20, 1
      %p164 = scmp.ne.s32.totalorder %s159, %s161
      %p165 = scmp.eq.s32.totalorder %s20, 0
      %p166 = por %p164, %p165
      %p167 = scmp.ne.s32.totalorder %s159, %s161
      %p168 = scmp.eq.s32.totalorder %s25, 1
      %p169 = por %p167, %p168
      %p170 = scmp.ne.s32.totalorder %s161, %s162
      %p171 = scmp.eq.s32.totalorder %s25, 0
      %p172 = por %p170, %p171
      %p173 = scmp.ne.s32.totalorder %s161, %s162
      %p174 = scmp.eq.s32.totalorder %s26, 1
      %p175 = por %p173, %p174
      %p177 = scmp.ne.s32.totalorder %s162, %s176
      %p178 = scmp.eq.s32.totalorder %s26, 0
      %p179 = por %p177, %p178
      %s181 = sadd.s32 %s180, 1
      %p184 = scmp.eq.s32.totalorder %s20, 1
      %p185 = scmp.ne.s32.totalorder %s180, %s182
      %p186 = scmp.eq.s32.totalorder %s20, 0
      %p187 = por %p185, %p186
      %p188 = scmp.ne.s32.totalorder %s180, %s182
      %p189 = scmp.eq.s32.totalorder %s25, 1
      %p190 = por %p188, %p189
      %p191 = scmp.ne.s32.totalorder %s182, %s183
      %p192 = scmp.eq.s32.totalorder %s25, 0
      %p193 = por %p191, %p192
      %p194 = scmp.ne.s32.totalorder %s182, %s183
      %p195 = scmp.eq.s32.totalorder %s26, 1
      %p196 = por %p194, %p195
      %p198 = scmp.ne.s32.totalorder %s183, %s197
      %p199 = scmp.eq.s32.totalorder %s26, 0
      %p200 = por %p198, %p199
      %s202 = sadd.s32 %s201, 1
      %p205 = scmp.eq.s32.totalorder %s20, 1
      %p206 = scmp.ne.s32.totalorder %s201, %s203
      %p207 = scmp.eq.s32.totalorder %s20, 0
      %p208 = por %p206, %p207
      %p209 = scmp.ne.s32.totalorder %s201, %s203
      %p210 = scmp.eq.s32.totalorder %s25, 1
      %p211 = por %p209, %p210
      %p212 = scmp.ne.s32.totalorder %s203, %s204
      %p213 = scmp.eq.s32.totalorder %s25, 0
      %p214 = por %p212, %p213
      %p215 = scmp.ne.s32.totalorder %s203, %s204
      %p216 = scmp.eq.s32.totalorder %s26, 1
      %p217 = por %p215, %p216
      %p219 = scmp.ne.s32.totalorder %s204, %s218
      %p220 = scmp.eq.s32.totalorder %s26, 0
      %p221 = por %p219, %p220
      %s223 = sadd.s32 %s222, 1
      %p226 = scmp.eq.s32.totalorder %s20, 1
      %p227 = scmp.ne.s32.totalorder %s222, %s224
      %p228 = scmp.eq.s32.totalorder %s20, 0
      %p229 = por %p227, %p228
      %p230 = scmp.ne.s32.totalorder %s222, %s224
      %p231 = scmp.eq.s32.totalorder %s25, 1
      %p232 = por %p230, %p231
      %p233 = scmp.ne.s32.totalorder %s224, %s225
      %p234 = scmp.eq.s32.totalorder %s25, 0
      %p235 = por %p233, %p234
      %p236 = scmp.ne.s32.totalorder %s224, %s225
      %p237 = scmp.eq.s32.totalorder %s26, 1
      %p238 = por %p236, %p237
      %p240 = scmp.ne.s32.totalorder %s225, %s239
      %p241 = scmp.eq.s32.totalorder %s26, 0
      %p242 = por %p240, %p241
      %s244 = sadd.s32 %s243, 1
      %p247 = scmp.eq.s32.totalorder %s20, 1
      %p248 = scmp.ne.s32.totalorder %s243, %s245
      %p249 = scmp.eq.s32.totalorder %s20, 0
      %p250 = por %p248, %p249
      %p251 = scmp.ne.s32.totalorder %s243, %s245
      %p252 = scmp.eq.s32.totalorder %s25, 1
      %p253 = por %p251, %p252
      %p254 = scmp.ne.s32.totalorder %s245, %s246
      %p255 = scmp.eq.s32.totalorder %s25, 0
      %p256 = por %p254, %p255
      %p257 = scmp.ne.s32.totalorder %s245, %s246
      %p258 = scmp.eq.s32.totalorder %s26, 1
      %p259 = por %p257, %p258
      %p261 = scmp.ne.s32.totalorder %s246, %s260
      %p262 = scmp.eq.s32.totalorder %s26, 0
      %p263 = por %p261, %p262
      %s264 = ssub.s32 %s20, %s27
      %p265 = scmp.eq.s32.totalorder %s264, 0
      %s267 = sadd.s32 %s266, 1
      %s268 = scalar_select %p265, %s266, %s267
      %p271 = pneg %p265
      %p272 = scmp.eq.s32.totalorder %s20, 1
      %p273 = por %p271, %p272
      %p274 = scmp.ne.s32.totalorder %s266, %s269
      %p275 = scmp.eq.s32.totalorder %s20, 0
      %p276 = por %p274, %p275
      %p277 = scmp.ne.s32.totalorder %s266, %s269
      %p278 = scmp.eq.s32.totalorder %s25, 1
      %p279 = por %p277, %p278
      %p280 = scmp.ne.s32.totalorder %s269, %s270
      %p281 = scmp.eq.s32.totalorder %s25, 0
      %p282 = por %p280, %p281
      %p283 = scmp.ne.s32.totalorder %s269, %s270
      %p284 = scmp.eq.s32.totalorder %s26, 1
      %p285 = por %p283, %p284
      %p287 = scmp.ne.s32.totalorder %s270, %s286
      %p288 = scmp.eq.s32.totalorder %s26, 0
      %p289 = por %p287, %p288
      %p290 = scmp.le.s32.totalorder 1, %s20
      %p291 = scmp.lt.s32.totalorder %s20, 3
      %p292 = pnand %p290, %p291
      %p293 = pneg %p292
      // Predicated region
      $region9: #{attention_pool_2d.1} parent=5 // pred_check
        _
      $region10: #{attention_pool_2d.1} parent=5 // pred_check_branch
        %295 = sbr.rel (%p292) target = $region12
      $region11: #{attention_pool_2d.1} parent=5 // pred_region
        %s296 = ssub.s32 %s20, 1
        // Predicated region
        $region13: #{attention_pool_2d.1} parent=11 // pred_check
          %p297 = pneg %p67
        $region14: #{attention_pool_2d.1} parent=11 // pred_check_branch
          %299 = sbr.rel (%p297) target = $region16
        $region15: #{attention_pool_2d.1} parent=11 // pred_region
          _
        $region16: #{attention_pool_2d.1} parent=11 // pred_fallthru
          _
        // Predicated region
        $region17: #{attention_pool_2d.1} parent=11 // pred_check
          %p300 = pneg %p88
        $region18: #{attention_pool_2d.1} parent=11 // pred_check_branch
          %302 = sbr.rel (%p300) target = $region20
        $region19: #{attention_pool_2d.1} parent=11 // pred_region
          _
        $region20: #{attention_pool_2d.1} parent=11 // pred_fallthru
          _
        // Predicated region
        $region21: #{attention_pool_2d.1} parent=11 // pred_check
          %p303 = pneg %p109
        $region22: #{attention_pool_2d.1} parent=11 // pred_check_branch
          %305 = sbr.rel (%p303) target = $region24
        $region23: #{attention_pool_2d.1} parent=11 // pred_region
          _
        $region24: #{attention_pool_2d.1} parent=11 // pred_fallthru
          _
        // Predicated region
        $region25: #{attention_pool_2d.1} parent=11 // pred_check
          %p306 = pneg %p130
        $region26: #{attention_pool_2d.1} parent=11 // pred_check_branch
          %308 = sbr.rel (%p306) target = $region28
        $region27: #{attention_pool_2d.1} parent=11 // pred_region
          _
        $region28: #{attention_pool_2d.1} parent=11 // pred_fallthru
          _
        // Predicated region
        $region29: #{attention_pool_2d.1} parent=11 // pred_check
          %p309 = pneg %p151
        $region30: #{attention_pool_2d.1} parent=11 // pred_check_branch
          %311 = sbr.rel (%p309) target = $region32
        $region31: #{attention_pool_2d.1} parent=11 // pred_region
          _
        $region32: #{attention_pool_2d.1} parent=11 // pred_fallthru
          _
        // Predicated region
        $region33: #{attention_pool_2d.1} parent=11 // pred_check
          %p312 = pneg %p172
        $region34: #{attention_pool_2d.1} parent=11 // pred_check_branch
          %314 = sbr.rel (%p312) target = $region36
        $region35: #{attention_pool_2d.1} parent=11 // pred_region
          _
        $region36: #{attention_pool_2d.1} parent=11 // pred_fallthru
          _
        // Predicated region
        $region37: #{attention_pool_2d.1} parent=11 // pred_check
          %p315 = pneg %p193
        $region38: #{attention_pool_2d.1} parent=11 // pred_check_branch
          %317 = sbr.rel (%p315) target = $region40
        $region39: #{attention_pool_2d.1} parent=11 // pred_region
          _
        $region40: #{attention_pool_2d.1} parent=11 // pred_fallthru
          _
        // Predicated region
        $region41: #{attention_pool_2d.1} parent=11 // pred_check
          %p318 = pneg %p214
        $region42: #{attention_pool_2d.1} parent=11 // pred_check_branch
          %320 = sbr.rel (%p318) target = $region44
        $region43: #{attention_pool_2d.1} parent=11 // pred_region
          _
        $region44: #{attention_pool_2d.1} parent=11 // pred_fallthru
          _
        // Predicated region
        $region45: #{attention_pool_2d.1} parent=11 // pred_check
          %p321 = pneg %p235
        $region46: #{attention_pool_2d.1} parent=11 // pred_check_branch
          %323 = sbr.rel (%p321) target = $region48
        $region47: #{attention_pool_2d.1} parent=11 // pred_region
          _
        $region48: #{attention_pool_2d.1} parent=11 // pred_fallthru
          _
        // Predicated region
        $region49: #{attention_pool_2d.1} parent=11 // pred_check
          %p324 = pneg %p256
        $region50: #{attention_pool_2d.1} parent=11 // pred_check_branch
          %326 = sbr.rel (%p324) target = $region52
        $region51: #{attention_pool_2d.1} parent=11 // pred_region
          _
        $region52: #{attention_pool_2d.1} parent=11 // pred_fallthru
          _
      $region12: #{attention_pool_2d.1} parent=5 // pred_fallthru
        _
      %p327 = scmp.lt.s32.totalorder %s20, 2
      // Predicated region
      $region53: #{attention_pool_2d.1} parent=5 // pred_check
        %p328 = pneg %p327
      $region54: #{attention_pool_2d.1} parent=5 // pred_check_branch
        %330 = sbr.rel (%p328) target = $region56
      $region55: #{attention_pool_2d.1} parent=5 // pred_region
        // Predicated region
        $region57: #{attention_pool_2d.1} parent=55 // pred_check
          %p331 = pneg %p40
        $region58: #{attention_pool_2d.1} parent=55 // pred_check_branch
          %333 = sbr.rel (%p331) target = $region60
        $region59: #{attention_pool_2d.1} parent=55 // pred_region
          %s334 = smul.u32 2, %s20
          %p335 = scmp.lt.s32.totalorder %s334, 3
          %s336 = scalar_select %p335, %s334, 3
          %s337 = smul.addr %s336, 2
          %s338 = smul.addr %s337, 4
          %s339 = scalar_lea.vmem %s0, %s338
          %s340 = smul.u32 2, %s20
        $region60: #{attention_pool_2d.1} parent=55 // pred_fallthru
          _
      $region56: #{attention_pool_2d.1} parent=5 // pred_fallthru
        _
      %p341 = scmp.le.s32.totalorder 1, %s20
      %p342 = scmp.lt.s32.totalorder %s20, 3
      %p343 = pnand %p341, %p342
      %p344 = pneg %p343
      // Predicated region
      $region61: #{attention_pool_2d.1} parent=5 // pred_check
        _
      $region62: #{attention_pool_2d.1} parent=5 // pred_check_branch
        %346 = sbr.rel (%p343) target = $region64
      $region63: #{attention_pool_2d.1} parent=5 // pred_region
        %s347 = ssub.s32 %s20, 1
        %s348 = smul.u32 2, %s25
        %p349 = scmp.lt.s32.totalorder %s348, 3
        %s350 = scalar_select %p349, %s348, 3
        %s351 = smul.addr %s350, 2
        %s352 = smul.addr %s351, 4
        %s353 = scalar_lea.vmem %s0, %s352
        %p354 = pneg %p46
        %p355 = pneg %p43
        %p356 = pneg %p67
        %p357 = pneg %p64
        %p358 = pneg %p88
        %p359 = pneg %p85
        %p360 = pneg %p109
        %p361 = pneg %p106
        %p362 = pneg %p130
        %p363 = pneg %p127
        %p364 = pneg %p151
        %p365 = pneg %p148
        %p366 = pneg %p172
        %p367 = pneg %p169
        %p368 = pneg %p193
        %p369 = pneg %p190
        %p370 = pneg %p214
        %p371 = pneg %p211
        %p372 = pneg %p235
        %p373 = pneg %p232
        %p374 = pneg %p256
        %p375 = pneg %p253
        %p376 = pneg %p282
        %p377 = pneg %p279
        %s378 = sand.u32 %s269, 1
        %s379 = scalar_lea.sflag [#allocation3], %s378
        %s380 = sand.u32 %s269, 1
        %s381 = smul.addr %s380, 2
        %s382 = scalar_lea.vmem [#allocation2], %s381
        %s383 = smul.u32 2, %s25
        %p384 = scmp.lt.s32.totalorder %s383, 3
        %s385 = scalar_select %p384, %s383, 3
        %s386 = smul.addr %s385, 2
        %s387 = smul.addr %s386, 4
        %s388 = scalar_lea.vmem %s0, %s387
        %s389 = smul.u32 2, %s25
        %v391 = vld [vmem:[%s388] sm:$0xf]
        %v392 = vld [vmem:[%s388 + $0x4] sm:$0xf]
        %v393 = vld [vmem:[%s388 + $0x8] sm:$0xf]
        %v394 = vld [vmem:[%s388 + $0xc] sm:$0xf]
        %v395 = vunpack.c.l.bf16 %v391
        %v396 = vunpack.c.l.bf16 %v392
        %v397 = vunpack.c.l.bf16 %v393
        %v398 = vunpack.c.l.bf16 %v394
        %vm399 = vcmask 261120
        %v400 = vsel %vm399, %v395, 0.0
        %v401 = vsel %vm399, %v396, 0.0
        %v402 = vadd.f32 %v400, %v401
        %v403 = vrot.slane %v402, 4
        %v404 = vadd.f32 %v402, %v403
        %v405 = vrot.slane %v404, 2
        %v406 = vadd.f32 %v404, %v405
        %v407 = vrot.slane %v406, 1
        %v408 = vadd.f32 %v406, %v407
        %v409 = vsel %vm399, %v397, 0.0
        %v410 = vsel %vm399, %v398, 0.0
        %v411 = vadd.f32 %v409, %v410
        %v412 = vrot.slane %v411, 4
        %v413 = vadd.f32 %v411, %v412
        %v414 = vrot.slane %v413, 2
        %v415 = vadd.f32 %v413, %v414
        %v416 = vrot.slane %v415, 1
        %v417 = vadd.f32 %v415, %v416
        %v418 = vmul.f32 %v408, 0.0625
        %v419 = vmul.f32 %v417, 0.0625
        %v420 = vld [vmem:[%s1] sm:$0x1]
        %v421 = vunpack.c.l.bf16 %v420
        %v422 = vlaneseq
        %v423 = vshrl.u32 %v422, 7
        %v424 = vsub.s32 0, %v423
        %v425 = vrot.slane %v421, %v424
        %v426 = vadd.f32 %v418, %v425
        %v427 = vadd.f32 %v419, %v425
        %v428 = vpack.c.bf16 %v426, %v426
        %v429 = vpack.c.bf16 %v427, %v427
        %v430 = vld [vmem:[%s2] sm:$0xf]
        %v431 = vld [vmem:[%s2 + $0x4] sm:$0xf]
        %v432 = vadd.bf16 %v391, %v430
        %v433 = vadd.bf16 %v392, %v431
        %v434 = vadd.bf16 %v393, %v430
        %v435 = vadd.bf16 %v394, %v431
        %v436 = vld [vmem:[%s3] sm:$0xf]
        %v437 = vld [vmem:[%s3 + $0x4] sm:$0xf]
        %v438 = vld [vmem:[%s3 + $0x8] sm:$0xf]
        %v439 = vld [vmem:[%s3 + $0xc] sm:$0xf]
        %v440 = vld [vmem:[%s4] sm:$0x1]
        %v442 = vlaneseq
        %v443 = vshrl.u32 %v442, 7
        %v444 = vsub.s32 0, %v443
        %v445 = vrot.slane %v440, %v444
        %v449 = vunpack.c.l.b16 %v428
        %v450 = vunpack.c.l.b16 %v429
        %v451 = vrot.slane %v450, 7
        %vm452 = vcmask 1041409
        %v453 = vsel %vm452, %v451, %v449
        %v454 = vpack.c.b16 %v453, %v453
        %v459 = vunpack.c.l.b16 %v436
        %v460 = vunpack.c.l.b16 %v437
        %v461 = vunpack.c.l.b16 %v438
        %v462 = vunpack.c.l.b16 %v439
        %v463 = vpack.c.b16 %v460, %v459
        %v464 = vpack.c.b16 %v462, %v461
        %v468 = vsel %vm399, %v454, 0
        %470 = vmatprep.subr.bf16.mxu0 0
        %471 = vmatpush1.bf16.msra.mxu0 %v463
        %472 = vmatprep.subr.bf16.mxu0 0
        %473 = vmatpush1.bf16.msra.mxu0 %v464
        %474 = vmatprep.subr.bf16.mxu0 0
        %475 = vmatpush1.bf16.msra.mxu0 0
        %476 = vmatprep.subr.bf16.mxu0 0
        %477 = vmatpush1.bf16.msra.mxu0 0
        %478 = vmatprep.subr.bf16.mxu0 0
        %479 = vmatpush1.bf16.msra.mxu0 0
        %480 = vmatprep.subr.bf16.mxu0 0
        %481 = vmatpush1.bf16.msra.mxu0 0
        %482 = vmatprep.subr.bf16.mxu0 0
        %483 = vmatpush1.bf16.msra.mxu0 0
        %484 = vmatprep.subr.bf16.mxu0 0
        %485 = vmatpush1.bf16.msra.mxu0 0
        %486 = vmatprep.subr.bf16.mxu0 0
        %487 = vmatpush1.bf16.msra.mxu0 0
        %488 = vmatprep.subr.bf16.mxu0 0
        %489 = vmatpush1.bf16.msra.mxu0 0
        %490 = vmatprep.subr.bf16.mxu0 0
        %491 = vmatpush1.bf16.msra.mxu0 0
        %492 = vmatprep.subr.bf16.mxu0 0
        %493 = vmatpush1.bf16.msra.mxu0 0
        %494 = vmatprep.subr.bf16.mxu0 0
        %495 = vmatpush1.bf16.msra.mxu0 0
        %496 = vmatprep.subr.bf16.mxu0 0
        %497 = vmatpush1.bf16.msra.mxu0 0
        %498 = vmatprep.subr.bf16.mxu0 0
        %499 = vmatpush1.bf16.msra.mxu0 0
        %500 = vmatprep.subr.bf16.mxu0 0
        %501 = vmatpush1.bf16.msra.mxu0 0
        %502 = vmatprep.mubr.bf16.mxu0 0
        %503 = vmatmul.mubr.bf16.gmra.mrb[0].mxu0 %v468
        %v504 = vpop.f32.mrb[0].mxu0
        %v505 = vadd.f32 %v445, %v504
        %v506 = vpop.f32.mrb[0].mxu0
        %v507 = vpop.f32.mrb[0].mxu0
        %v508 = vpop.f32.mrb[0].mxu0
        %509 = vdwg.mxu0
        %v510 = vld [vmem:[%s5] sm:$0xf]
        %v511 = vld [vmem:[%s5 + $0x4] sm:$0xf]
        %v512 = vld [vmem:[%s5 + $0x8] sm:$0xf]
        %v513 = vld [vmem:[%s5 + $0xc] sm:$0xf]
        %v514 = vld [vmem:[%s6] sm:$0x1]
        %v516 = vlaneseq
        %v517 = vshrl.u32 %v516, 7
        %v518 = vsub.s32 0, %v517
        %v519 = vrot.slane %v514, %v518
        %v525 = vunpack.c.l.b16 %v510
        %v526 = vunpack.c.l.b16 %v511
        %v527 = vunpack.c.l.b16 %v512
        %v528 = vunpack.c.l.b16 %v513
        %v529 = vpack.c.b16 %v526, %v525
        %v530 = vpack.c.b16 %v528, %v527
        %533 = vmatprep.subr.bf16.mxu0 0
        %534 = vmatpush1.bf16.msra.mxu0 %v529
        %535 = vmatprep.subr.bf16.mxu0 0
        %536 = vmatpush1.bf16.msra.mxu0 %v530
        %537 = vmatprep.subr.bf16.mxu0 0
        %538 = vmatpush1.bf16.msra.mxu0 0
        %539 = vmatprep.subr.bf16.mxu0 0
        %540 = vmatpush1.bf16.msra.mxu0 0
        %541 = vmatprep.subr.bf16.mxu0 0
        %542 = vmatpush1.bf16.msra.mxu0 0
        %543 = vmatprep.subr.bf16.mxu0 0
        %544 = vmatpush1.bf16.msra.mxu0 0
        %545 = vmatprep.subr.bf16.mxu0 0
        %546 = vmatpush1.bf16.msra.mxu0 0
        %547 = vmatprep.subr.bf16.mxu0 0
        %548 = vmatpush1.bf16.msra.mxu0 0
        %549 = vmatprep.subr.bf16.mxu0 0
        %550 = vmatpush1.bf16.msra.mxu0 0
        %551 = vmatprep.subr.bf16.mxu0 0
        %552 = vmatpush1.bf16.msra.mxu0 0
        %553 = vmatprep.subr.bf16.mxu0 0
        %554 = vmatpush1.bf16.msra.mxu0 0
        %555 = vmatprep.subr.bf16.mxu0 0
        %556 = vmatpush1.bf16.msra.mxu0 0
        %557 = vmatprep.subr.bf16.mxu0 0
        %558 = vmatpush1.bf16.msra.mxu0 0
        %559 = vmatprep.subr.bf16.mxu0 0
        %560 = vmatpush1.bf16.msra.mxu0 0
        %561 = vmatprep.subr.bf16.mxu0 0
        %562 = vmatpush1.bf16.msra.mxu0 0
        %563 = vmatprep.subr.bf16.mxu0 0
        %564 = vmatpush1.bf16.msra.mxu0 0
        %565 = vmatprep.mubr.bf16.mxu0 0
        %566 = vmatmul.mubr.bf16.gmra.mrb[0].mxu0 %v468
        %v567 = vpop.f32.mrb[0].mxu0
        %v568 = vadd.f32 %v519, %v567
        %v569 = vpop.f32.mrb[0].mxu0
        %v570 = vpop.f32.mrb[0].mxu0
        %v571 = vpop.f32.mrb[0].mxu0
        %572 = vdwg.mxu0
        %v577 = vunpack.c.l.b16 %v432
        %v578 = vunpack.c.l.b16 %v433
        %v579 = vunpack.c.l.b16 %v434
        %v580 = vunpack.c.l.b16 %v435
        %v581 = vpack.c.b16 %v578, %v577
        %v582 = vpack.c.b16 %v580, %v579
        %v584 = vsel %vm399, %v581, 0
        %v587 = vsel %vm399, %v582, 0
        %589 = vmatprep.subr.bf16.mxu0 0
        %590 = vmatpush1.bf16.msra.mxu0 %v529
        %591 = vmatprep.subr.bf16.mxu0 0
        %592 = vmatpush1.bf16.msra.mxu0 %v530
        %593 = vmatprep.subr.bf16.mxu0 0
        %594 = vmatpush1.bf16.msra.mxu0 0
        %595 = vmatprep.subr.bf16.mxu0 0
        %596 = vmatpush1.bf16.msra.mxu0 0
        %597 = vmatprep.subr.bf16.mxu0 0
        %598 = vmatpush1.bf16.msra.mxu0 0
        %599 = vmatprep.subr.bf16.mxu0 0
        %600 = vmatpush1.bf16.msra.mxu0 0
        %601 = vmatprep.subr.bf16.mxu0 0
        %602 = vmatpush1.bf16.msra.mxu0 0
        %603 = vmatprep.subr.bf16.mxu0 0
        %604 = vmatpush1.bf16.msra.mxu0 0
        %605 = vmatprep.subr.bf16.mxu0 0
        %606 = vmatpush1.bf16.msra.mxu0 0
        %607 = vmatprep.subr.bf16.mxu0 0
        %608 = vmatpush1.bf16.msra.mxu0 0
        %609 = vmatprep.subr.bf16.mxu0 0
        %610 = vmatpush1.bf16.msra.mxu0 0
        %611 = vmatprep.subr.bf16.mxu0 0
        %612 = vmatpush1.bf16.msra.mxu0 0
        %613 = vmatprep.subr.bf16.mxu0 0
        %614 = vmatpush1.bf16.msra.mxu0 0
        %615 = vmatprep.subr.bf16.mxu0 0
        %616 = vmatpush1.bf16.msra.mxu0 0
        %617 = vmatprep.subr.bf16.mxu0 0
        %618 = vmatpush1.bf16.msra.mxu0 0
        %619 = vmatprep.subr.bf16.mxu0 0
        %620 = vmatpush1.bf16.msra.mxu0 0
        %621 = vmatprep.mubr.bf16.mxu0 0
        %622 = vmatmul.mubr.bf16.gmra.mrb[0].mxu0 %v584
        %v623 = vpop.f32.mrb[0].mxu0
        %v624 = vadd.f32 %v519, %v623
        %v625 = vpop.f32.mrb[0].mxu0
        %v626 = vpop.f32.mrb[0].mxu0
        %v627 = vadd.f32 %v519, %v626
        %v628 = vpop.f32.mrb[0].mxu0
        %629 = vmatprep.mubr.bf16.mxu0 0
        %630 = vmatmul.mubr.bf16.gmra.mrb[0].mxu0 %v587
        %v631 = vpop.f32.mrb[0].mxu0
        %v632 = vadd.f32 %v519, %v631
        %v633 = vpop.f32.mrb[0].mxu0
        %v634 = vpop.f32.mrb[0].mxu0
        %v635 = vadd.f32 %v519, %v634
        %v636 = vpop.f32.mrb[0].mxu0
        %637 = vdwg.mxu0
        %v638 = vld [vmem:[%s9] sm:$0xff]
        %v639 = vld [vmem:[%s9 + $0x8] sm:$0xff]
        %v640 = vld [vmem:[%s9 + $0x10] sm:$0xff]
        %v641 = vld [vmem:[%s9 + $0x18] sm:$0xff]
        %v642 = vmul.f32 %v568, %v505
        %v644 = vsel %vm399, %v642, 0
        %646 = vmatprep.subr.mxu0 0.0
        %647 = vmatpush1.msra.mxu0 %v638
        %648 = vmatprep.subr.mxu0 0.0
        %649 = vmatpush1.msra.mxu0 %v639
        %650 = vmatprep.subr.mxu0 0.0
        %651 = vmatpush1.msra.mxu0 %v640
        %652 = vmatprep.subr.mxu0 0.0
        %653 = vmatpush1.msra.mxu0 %v641
        %654 = vmatprep.subr.mxu0 0.0
        %655 = vmatpush1.msra.mxu0 0.0
        %656 = vmatprep.subr.mxu0 0.0
        %657 = vmatpush1.msra.mxu0 0.0
        %658 = vmatprep.subr.mxu0 0.0
        %659 = vmatpush1.msra.mxu0 0.0
        %660 = vmatprep.subr.mxu0 0.0
        %661 = vmatpush1.msra.mxu0 0.0
        %662 = vmatprep.subr.mxu0 0.0
        %663 = vmatpush1.msra.mxu0 0.0
        %664 = vmatprep.subr.mxu0 0.0
        %665 = vmatpush1.msra.mxu0 0.0
        %666 = vmatprep.subr.mxu0 0.0
        %667 = vmatpush1.msra.mxu0 0.0
        %668 = vmatprep.subr.mxu0 0.0
        %669 = vmatpush1.msra.mxu0 0.0
        %670 = vmatprep.subr.mxu0 0.0
        %671 = vmatpush1.msra.mxu0 0.0
        %672 = vmatprep.subr.mxu0 0.0
        %673 = vmatpush1.msra.mxu0 0.0
        %674 = vmatprep.subr.mxu0 0.0
        %675 = vmatpush1.msra.mxu0 0.0
        %676 = vmatprep.subr.mxu0 0.0
        %677 = vmatpush1.msra.mxu0 0.0
        %678 = vmatprep.subr.mxu0 0.0
        %679 = vmatpush1.msra.mxu0 0.0
        %680 = vmatprep.subr.mxu0 0.0
        %681 = vmatpush1.msra.mxu0 0.0
        %682 = vmatprep.subr.mxu0 0.0
        %683 = vmatpush1.msra.mxu0 0.0
        %684 = vmatprep.subr.mxu0 0.0
        %685 = vmatpush1.msra.mxu0 0.0
        %686 = vmatprep.subr.mxu0 0.0
        %687 = vmatpush1.msra.mxu0 0.0
        %688 = vmatprep.subr.mxu0 0.0
        %689 = vmatpush1.msra.mxu0 0.0
        %690 = vmatprep.subr.mxu0 0.0
        %691 = vmatpush1.msra.mxu0 0.0
        %692 = vmatprep.subr.mxu0 0.0
        %693 = vmatpush1.msra.mxu0 0.0
        %694 = vmatprep.subr.mxu0 0.0
        %695 = vmatpush1.msra.mxu0 0.0
        %696 = vmatprep.subr.mxu0 0.0
        %697 = vmatpush1.msra.mxu0 0.0
        %698 = vmatprep.subr.mxu0 0.0
        %699 = vmatpush1.msra.mxu0 0.0
        %700 = vmatprep.subr.mxu0 0.0
        %701 = vmatpush1.msra.mxu0 0.0
        %702 = vmatprep.subr.mxu0 0.0
        %703 = vmatpush1.msra.mxu0 0.0
        %704 = vmatprep.subr.mxu0 0.0
        %705 = vmatpush1.msra.mxu0 0.0
        %706 = vmatprep.subr.mxu0 0.0
        %707 = vmatpush1.msra.mxu0 0.0
        %708 = vmatprep.subr.mxu0 0.0
        %709 = vmatpush1.msra.mxu0 0.0
        %710 = vmatprep.mubr.f32.mxu0 0.0
        %711 = vmatmul.mubr.f32.gmra.mrb[0].mxu0 %v644
        %v712 = vpop.f32.mrb[0].mxu0
        %v713 = vadd.f32 0.0, %v712
        %v714 = vpop.f32.mrb[0].mxu0
        %715 = vdwg.mxu0
        %v718 = vunpack.c.l.s4 1966171168
        %v719 = vunpack.c.0.s8 %v718
        %v720 = vlaneseq
        %v721 = vshrl.u32 %v720, 7
        %v722 = vsub.s32 %v719, %v721
        %v723 = vrot.slane %v505, %v722
        %v724 = vcombine.high %v723, %v723
        %v726 = vunpack.c.l.s4 1966171168
        %v727 = vunpack.c.0.s8 %v726
        %v728 = vlaneseq
        %v729 = vshrl.u32 %v728, 7
        %v730 = vsub.s32 %v727, %v729
        %v731 = vrot.slane %v723, %v730
        %v733 = vunpack.c.l.s4 1966171168
        %v734 = vunpack.c.0.s8 %v733
        %v735 = vlaneseq
        %v736 = vshrl.u32 %v735, 7
        %v737 = vsub.s32 %v734, %v736
        %v738 = vrot.slane %v724, %v737
        %v739 = vlaneseq
        %v740 = vshrl.u32 %v739, 7
        %v741 = vsub.s32 0, %v740
        %v742 = vrot.slane %v731, %v741
        %v743 = vlaneseq
        %v744 = vshrl.u32 %v743, 7
        %v745 = vsub.s32 0, %v744
        %v746 = vrot.slane %v738, %v745
        %v749 = vmul.f32 %v624, %v742
        %v750 = vmul.f32 %v627, %v742
        %v751 = vmul.f32 %v632, %v746
        %v752 = vmul.f32 %v635, %v746
        %v754 = vsel %vm399, %v749, 0
        %v757 = vsel %vm399, %v750, 0
        %v760 = vsel %vm399, %v751, 0
        %v763 = vsel %vm399, %v752, 0
        %765 = vmatprep.subr.mxu0 0.0
        %766 = vmatpush1.msra.mxu0 %v638
        %767 = vmatprep.subr.mxu0 0.0
        %768 = vmatpush1.msra.mxu0 %v639
        %769 = vmatprep.subr.mxu0 0.0
        %770 = vmatpush1.msra.mxu0 %v640
        %771 = vmatprep.subr.mxu0 0.0
        %772 = vmatpush1.msra.mxu0 %v641
        %773 = vmatprep.subr.mxu0 0.0
        %774 = vmatpush1.msra.mxu0 0.0
        %775 = vmatprep.subr.mxu0 0.0
        %776 = vmatpush1.msra.mxu0 0.0
        %777 = vmatprep.subr.mxu0 0.0
        %778 = vmatpush1.msra.mxu0 0.0
        %779 = vmatprep.subr.mxu0 0.0
        %780 = vmatpush1.msra.mxu0 0.0
        %781 = vmatprep.subr.mxu0 0.0
        %782 = vmatpush1.msra.mxu0 0.0
        %783 = vmatprep.subr.mxu0 0.0
        %784 = vmatpush1.msra.mxu0 0.0
        %785 = vmatprep.subr.mxu0 0.0
        %786 = vmatpush1.msra.mxu0 0.0
        %787 = vmatprep.subr.mxu0 0.0
        %788 = vmatpush1.msra.mxu0 0.0
        %789 = vmatprep.subr.mxu0 0.0
        %790 = vmatpush1.msra.mxu0 0.0
        %791 = vmatprep.subr.mxu0 0.0
        %792 = vmatpush1.msra.mxu0 0.0
        %793 = vmatprep.subr.mxu0 0.0
        %794 = vmatpush1.msra.mxu0 0.0
        %795 = vmatprep.subr.mxu0 0.0
        %796 = vmatpush1.msra.mxu0 0.0
        %797 = vmatprep.subr.mxu0 0.0
        %798 = vmatpush1.msra.mxu0 0.0
        %799 = vmatprep.subr.mxu0 0.0
        %800 = vmatpush1.msra.mxu0 0.0
        %801 = vmatprep.subr.mxu0 0.0
        %802 = vmatpush1.msra.mxu0 0.0
        %803 = vmatprep.subr.mxu0 0.0
        %804 = vmatpush1.msra.mxu0 0.0
        %805 = vmatprep.subr.mxu0 0.0
        %806 = vmatpush1.msra.mxu0 0.0
        %807 = vmatprep.subr.mxu0 0.0
        %808 = vmatpush1.msra.mxu0 0.0
        %809 = vmatprep.subr.mxu0 0.0
        %810 = vmatpush1.msra.mxu0 0.0
        %811 = vmatprep.subr.mxu0 0.0
        %812 = vmatpush1.msra.mxu0 0.0
        %813 = vmatprep.subr.mxu0 0.0
        %814 = vmatpush1.msra.mxu0 0.0
        %815 = vmatprep.subr.mxu0 0.0
        %816 = vmatpush1.msra.mxu0 0.0
        %817 = vmatprep.subr.mxu0 0.0
        %818 = vmatpush1.msra.mxu0 0.0
        %819 = vmatprep.subr.mxu0 0.0
        %820 = vmatpush1.msra.mxu0 0.0
        %821 = vmatprep.subr.mxu0 0.0
        %822 = vmatpush1.msra.mxu0 0.0
        %823 = vmatprep.subr.mxu0 0.0
        %824 = vmatpush1.msra.mxu0 0.0
        %825 = vmatprep.subr.mxu0 0.0
        %826 = vmatpush1.msra.mxu0 0.0
        %827 = vmatprep.subr.mxu0 0.0
        %828 = vmatpush1.msra.mxu0 0.0
        %829 = vmatprep.mubr.f32.mxu0 0.0
        %830 = vmatmul.mubr.f32.gmra.mrb[0].mxu0 %v754
        %v831 = vpop.f32.mrb[0].mxu0
        %v832 = vadd.f32 0.0, %v831
        %v833 = vpop.f32.mrb[0].mxu0
        %834 = vmatprep.mubr.f32.mxu0 0.0
        %835 = vmatmul.mubr.f32.gmra.mrb[0].mxu0 %v757
        %v836 = vpop.f32.mrb[0].mxu0
        %v837 = vadd.f32 0.0, %v836
        %v838 = vpop.f32.mrb[0].mxu0
        %839 = vmatprep.mubr.f32.mxu0 0.0
        %840 = vmatmul.mubr.f32.gmra.mrb[0].mxu0 %v760
        %v841 = vpop.f32.mrb[0].mxu0
        %v842 = vadd.f32 0.0, %v841
        %v843 = vpop.f32.mrb[0].mxu0
        %844 = vmatprep.mubr.f32.mxu0 0.0
        %845 = vmatmul.mubr.f32.gmra.mrb[0].mxu0 %v763
        %v846 = vpop.f32.mrb[0].mxu0
        %v847 = vadd.f32 0.0, %v846
        %v848 = vpop.f32.mrb[0].mxu0
        %849 = vdwg.mxu0
        %vm850 = vcmask 31744
        %v851 = vsel %vm850, %v832, -inf
        %v852 = vsel %vm850, %v837, -inf
        %v853 = vmax.f32 %v851, %v852
        %v854 = vrot.slane %v853, 4
        %v855 = vmax.f32 %v853, %v854
        %v856 = vrot.slane %v855, 2
        %v857 = vmax.f32 %v855, %v856
        %v858 = vrot.slane %v857, 1
        %v859 = vmax.f32 %v857, %v858
        %v860 = vsel %vm850, %v842, -inf
        %v861 = vsel %vm850, %v847, -inf
        %v862 = vmax.f32 %v860, %v861
        %v863 = vrot.slane %v862, 4
        %v864 = vmax.f32 %v862, %v863
        %v865 = vrot.slane %v864, 2
        %v866 = vmax.f32 %v864, %v865
        %v867 = vrot.slane %v866, 1
        %v868 = vmax.f32 %v866, %v867
        %v870 = vrot.slane %v713, 1
        %v873 = vmax.f32 %v859, %v713
        %v874 = vmax.f32 %v868, %v870
        %v877 = vrot.slane %v874, 7
        %v878 = vsel %vm452, %v877, %v873
        %v880 = vsub.f32 %v713, %v878
        %v881 = vmul.f32 %v880, 1.442695
        %v882 = vpow.pop %v881
        %v883 = vlaneseq
        %v884 = vshrl.u32 %v883, 7
        %v885 = vsub.s32 0, %v884
        %v886 = vrot.slane %v873, %v885
        %v887 = vlaneseq
        %v888 = vshrl.u32 %v887, 7
        %v889 = vsub.s32 0, %v888
        %v890 = vrot.slane %v874, %v889
        %v891 = vsub.f32 %v832, %v886
        %v892 = vsub.f32 %v837, %v886
        %v893 = vsub.f32 %v842, %v890
        %v894 = vsub.f32 %v847, %v890
        %v895 = vmul.f32 %v891, 1.442695
        %v896 = vpow.pop %v895
        %v897 = vmul.f32 %v892, 1.442695
        %v898 = vpow.pop %v897
        %v899 = vmul.f32 %v893, 1.442695
        %v900 = vpow.pop %v899
        %v901 = vmul.f32 %v894, 1.442695
        %v902 = vpow.pop %v901
        %v903 = vsel %vm850, %v896, 0.0
        %v904 = vsel %vm850, %v898, 0.0
        %v905 = vadd.f32 %v903, %v904
        %v906 = vrot.slane %v905, 4
        %v907 = vadd.f32 %v905, %v906
        %v908 = vrot.slane %v907, 2
        %v909 = vadd.f32 %v907, %v908
        %v910 = vrot.slane %v909, 1
        %v911 = vadd.f32 %v909, %v910
        %v912 = vsel %vm850, %v900, 0.0
        %v913 = vsel %vm850, %v902, 0.0
        %v914 = vadd.f32 %v912, %v913
        %v915 = vrot.slane %v914, 4
        %v916 = vadd.f32 %v914, %v915
        %v917 = vrot.slane %v916, 2
        %v918 = vadd.f32 %v916, %v917
        %v919 = vrot.slane %v918, 1
        %v920 = vadd.f32 %v918, %v919
        %v922 = vrot.slane %v882, 1
        %v925 = vadd.f32 %v911, %v882
        %v926 = vadd.f32 %v920, %v922
        %v927 = vrcp.pop %v925
        %v928 = vrcp.pop %v926
        %v931 = vrot.slane %v928, 7
        %v932 = vsel %vm452, %v931, %v927
        %v934 = vmul.f32 %v882, %v932
        %v935 = vlaneseq
        %v936 = vshrl.u32 %v935, 7
        %v937 = vsub.s32 0, %v936
        %v938 = vrot.slane %v927, %v937
        %v939 = vlaneseq
        %v940 = vshrl.u32 %v939, 7
        %v941 = vsub.s32 0, %v940
        %v942 = vrot.slane %v928, %v941
        %v943 = vmul.f32 %v896, %v938
        %v944 = vmul.f32 %v898, %v938
        %v945 = vmul.f32 %v900, %v942
        %v946 = vmul.f32 %v902, %v942
        %v947 = vld [vmem:[%s10] sm:$0xf]
        %v949 = vsel %vm850, %v934, 0
        %vm951 = vcmask 1043456
        %v953 = vsel %vm951, %v947, 0
        %955 = vmatprep.subr.mxu0 0.0
        %956 = vmatpush1.msra.mxu0 %v953
        %957 = vmatprep.subr.mxu0 0.0
        %958 = vmatpush1.msra.mxu0 0.0
        %959 = vmatprep.subr.mxu0 0.0
        %960 = vmatpush1.msra.mxu0 0.0
        %961 = vmatprep.subr.mxu0 0.0
        %962 = vmatpush1.msra.mxu0 0.0
        %963 = vmatprep.subr.mxu0 0.0
        %964 = vmatpush1.msra.mxu0 0.0
        %965 = vmatprep.subr.mxu0 0.0
        %966 = vmatpush1.msra.mxu0 0.0
        %967 = vmatprep.subr.mxu0 0.0
        %968 = vmatpush1.msra.mxu0 0.0
        %969 = vmatprep.subr.mxu0 0.0
        %970 = vmatpush1.msra.mxu0 0.0
        %971 = vmatprep.subr.mxu0 0.0
        %972 = vmatpush1.msra.mxu0 0.0
        %973 = vmatprep.subr.mxu0 0.0
        %974 = vmatpush1.msra.mxu0 0.0
        %975 = vmatprep.subr.mxu0 0.0
        %976 = vmatpush1.msra.mxu0 0.0
        %977 = vmatprep.subr.mxu0 0.0
        %978 = vmatpush1.msra.mxu0 0.0
        %979 = vmatprep.subr.mxu0 0.0
        %980 = vmatpush1.msra.mxu0 0.0
        %981 = vmatprep.subr.mxu0 0.0
        %982 = vmatpush1.msra.mxu0 0.0
        %983 = vmatprep.subr.mxu0 0.0
        %984 = vmatpush1.msra.mxu0 0.0
        %985 = vmatprep.subr.mxu0 0.0
        %986 = vmatpush1.msra.mxu0 0.0
        %987 = vmatprep.subr.mxu0 0.0
        %988 = vmatpush1.msra.mxu0 0.0
        %989 = vmatprep.subr.mxu0 0.0
        %990 = vmatpush1.msra.mxu0 0.0
        %991 = vmatprep.subr.mxu0 0.0
        %992 = vmatpush1.msra.mxu0 0.0
        %993 = vmatprep.subr.mxu0 0.0
        %994 = vmatpush1.msra.mxu0 0.0
        %995 = vmatprep.subr.mxu0 0.0
        %996 = vmatpush1.msra.mxu0 0.0
        %997 = vmatprep.subr.mxu0 0.0
        %998 = vmatpush1.msra.mxu0 0.0
        %999 = vmatprep.subr.mxu0 0.0
        %1000 = vmatpush1.msra.mxu0 0.0
        %1001 = vmatprep.subr.mxu0 0.0
        %1002 = vmatpush1.msra.mxu0 0.0
        %1003 = vmatprep.subr.mxu0 0.0
        %1004 = vmatpush1.msra.mxu0 0.0
        %1005 = vmatprep.subr.mxu0 0.0
        %1006 = vmatpush1.msra.mxu0 0.0
        %1007 = vmatprep.subr.mxu0 0.0
        %1008 = vmatpush1.msra.mxu0 0.0
        %1009 = vmatprep.subr.mxu0 0.0
        %1010 = vmatpush1.msra.mxu0 0.0
        %1011 = vmatprep.subr.mxu0 0.0
        %1012 = vmatpush1.msra.mxu0 0.0
        %1013 = vmatprep.subr.mxu0 0.0
        %1014 = vmatpush1.msra.mxu0 0.0
        %1015 = vmatprep.subr.mxu0 0.0
        %1016 = vmatpush1.msra.mxu0 0.0
        %1017 = vmatprep.subr.mxu0 0.0
        %1018 = vmatpush1.msra.mxu0 0.0
        %1019 = vmatprep.mubr.f32.mxu0 0.0
        %1020 = vmatmul.mubr.f32.gmra.mrb[0].mxu0 %v949
        %v1021 = vpop.f32.mrb[0].mxu0
        %v1022 = vadd.f32 0.0, %v1021
        %v1023 = vpop.f32.mrb[0].mxu0
        %1024 = vdwg.mxu0
        %v1026 = vsel %vm850, %v943, 0
        %v1029 = vsel %vm850, %v944, 0
        %v1032 = vsel %vm850, %v945, 0
        %v1035 = vsel %vm850, %v946, 0
        %1037 = vmatprep.subr.mxu0 0.0
        %1038 = vmatpush1.msra.mxu0 %v953
        %1039 = vmatprep.subr.mxu0 0.0
        %1040 = vmatpush1.msra.mxu0 0.0
        %1041 = vmatprep.subr.mxu0 0.0
        %1042 = vmatpush1.msra.mxu0 0.0
        %1043 = vmatprep.subr.mxu0 0.0
        %1044 = vmatpush1.msra.mxu0 0.0
        %1045 = vmatprep.subr.mxu0 0.0
        %1046 = vmatpush1.msra.mxu0 0.0
        %1047 = vmatprep.subr.mxu0 0.0
        %1048 = vmatpush1.msra.mxu0 0.0
        %1049 = vmatprep.subr.mxu0 0.0
        %1050 = vmatpush1.msra.mxu0 0.0
        %1051 = vmatprep.subr.mxu0 0.0
        %1052 = vmatpush1.msra.mxu0 0.0
        %1053 = vmatprep.subr.mxu0 0.0
        %1054 = vmatpush1.msra.mxu0 0.0
        %1055 = vmatprep.subr.mxu0 0.0
        %1056 = vmatpush1.msra.mxu0 0.0
        %1057 = vmatprep.subr.mxu0 0.0
        %1058 = vmatpush1.msra.mxu0 0.0
        %1059 = vmatprep.subr.mxu0 0.0
        %1060 = vmatpush1.msra.mxu0 0.0
        %1061 = vmatprep.subr.mxu0 0.0
        %1062 = vmatpush1.msra.mxu0 0.0
        %1063 = vmatprep.subr.mxu0 0.0
        %1064 = vmatpush1.msra.mxu0 0.0
        %1065 = vmatprep.subr.mxu0 0.0
        %1066 = vmatpush1.msra.mxu0 0.0
        %1067 = vmatprep.subr.mxu0 0.0
        %1068 = vmatpush1.msra.mxu0 0.0
        %1069 = vmatprep.subr.mxu0 0.0
        %1070 = vmatpush1.msra.mxu0 0.0
        %1071 = vmatprep.subr.mxu0 0.0
        %1072 = vmatpush1.msra.mxu0 0.0
        %1073 = vmatprep.subr.mxu0 0.0
        %1074 = vmatpush1.msra.mxu0 0.0
        %1075 = vmatprep.subr.mxu0 0.0
        %1076 = vmatpush1.msra.mxu0 0.0
        %1077 = vmatprep.subr.mxu0 0.0
        %1078 = vmatpush1.msra.mxu0 0.0
        %1079 = vmatprep.subr.mxu0 0.0
        %1080 = vmatpush1.msra.mxu0 0.0
        %1081 = vmatprep.subr.mxu0 0.0
        %1082 = vmatpush1.msra.mxu0 0.0
        %1083 = vmatprep.subr.mxu0 0.0
        %1084 = vmatpush1.msra.mxu0 0.0
        %1085 = vmatprep.subr.mxu0 0.0
        %1086 = vmatpush1.msra.mxu0 0.0
        %1087 = vmatprep.subr.mxu0 0.0
        %1088 = vmatpush1.msra.mxu0 0.0
        %1089 = vmatprep.subr.mxu0 0.0
        %1090 = vmatpush1.msra.mxu0 0.0
        %1091 = vmatprep.subr.mxu0 0.0
        %1092 = vmatpush1.msra.mxu0 0.0
        %1093 = vmatprep.subr.mxu0 0.0
        %1094 = vmatpush1.msra.mxu0 0.0
        %1095 = vmatprep.subr.mxu0 0.0
        %1096 = vmatpush1.msra.mxu0 0.0
        %1097 = vmatprep.subr.mxu0 0.0
        %1098 = vmatpush1.msra.mxu0 0.0
        %1099 = vmatprep.subr.mxu0 0.0
        %1100 = vmatpush1.msra.mxu0 0.0
        %1101 = vmatprep.mubr.f32.mxu0 0.0
        %1102 = vmatmul.mubr.f32.gmra.mrb[0].mxu0 %v1026
        %v1103 = vpop.f32.mrb[0].mxu0
        %v1104 = vadd.f32 0.0, %v1103
        %v1105 = vpop.f32.mrb[0].mxu0
        %1106 = vmatprep.mubr.f32.mxu0 0.0
        %1107 = vmatmul.mubr.f32.gmra.mrb[0].mxu0 %v1029
        %v1108 = vpop.f32.mrb[0].mxu0
        %v1109 = vadd.f32 0.0, %v1108
        %v1110 = vpop.f32.mrb[0].mxu0
        %1111 = vmatprep.mubr.f32.mxu0 0.0
        %1112 = vmatmul.mubr.f32.gmra.mrb[0].mxu0 %v1032
        %v1113 = vpop.f32.mrb[0].mxu0
        %v1114 = vadd.f32 0.0, %v1113
        %v1115 = vpop.f32.mrb[0].mxu0
        %1116 = vmatprep.mubr.f32.mxu0 0.0
        %1117 = vmatmul.mubr.f32.gmra.mrb[0].mxu0 %v1035
        %v1118 = vpop.f32.mrb[0].mxu0
        %v1119 = vadd.f32 0.0, %v1118
        %v1120 = vpop.f32.mrb[0].mxu0
        %1121 = vdwg.mxu0
        %1123 = vrot.lane.b32.xlu0 %v568, 96
        %v1124 = vpop.permute.xlu0 %1123
        %v1126 = vmul.f32 %v1022, %v1124
        %1131 = vrot.lane.b32.xlu0 %v624, 96
        %v1132 = vpop.permute.xlu0 %1131
        %1133 = vrot.lane.b32.xlu0 %v627, 96
        %v1134 = vpop.permute.xlu0 %1133
        %1135 = vrot.lane.b32.xlu0 %v632, 96
        %v1136 = vpop.permute.xlu0 %1135
        %1137 = vrot.lane.b32.xlu0 %v635, 96
        %v1138 = vpop.permute.xlu0 %1137
        %v1143 = vmul.f32 %v1104, %v1132
        %v1144 = vmul.f32 %v1109, %v1134
        %v1145 = vmul.f32 %v1114, %v1136
        %v1146 = vmul.f32 %v1119, %v1138
        %v1147 = vsel %vm399, %v1143, 0.0
        %v1148 = vsel %vm399, %v1144, 0.0
        %v1149 = vadd.f32 %v1147, %v1148
        %v1150 = vrot.slane %v1149, 4
        %v1151 = vadd.f32 %v1149, %v1150
        %v1152 = vrot.slane %v1151, 2
        %v1153 = vadd.f32 %v1151, %v1152
        %v1154 = vrot.slane %v1153, 1
        %v1155 = vadd.f32 %v1153, %v1154
        %v1156 = vsel %vm399, %v1145, 0.0
        %v1157 = vsel %vm399, %v1146, 0.0
        %v1158 = vadd.f32 %v1156, %v1157
        %v1159 = vrot.slane %v1158, 4
        %v1160 = vadd.f32 %v1158, %v1159
        %v1161 = vrot.slane %v1160, 2
        %v1162 = vadd.f32 %v1160, %v1161
        %v1163 = vrot.slane %v1162, 1
        %v1164 = vadd.f32 %v1162, %v1163
        %v1167 = vsel %vm452, %v1164, %v1155
        %v1169 = vadd.f32 %v1126, %v1167
        %v1170 = vpack.c.bf16 %v1169, %v1169
        %v1171 = vld [vmem:[%s7] sm:$0xf]
        %v1172 = vld [vmem:[%s7 + $0x4] sm:$0xf]
        %v1173 = vld [vmem:[%s7 + $0x8] sm:$0xf]
        %v1174 = vld [vmem:[%s7 + $0xc] sm:$0xf]
        %v1175 = vld [vmem:[%s8] sm:$0x1]
        %v1177 = vlaneseq
        %v1178 = vshrl.u32 %v1177, 7
        %v1179 = vsub.s32 0, %v1178
        %v1180 = vrot.slane %v1175, %v1179
        %v1186 = vunpack.c.l.b16 %v1171
        %v1187 = vunpack.c.l.b16 %v1172
        %v1188 = vunpack.c.l.b16 %v1173
        %v1189 = vunpack.c.l.b16 %v1174
        %v1190 = vpack.c.b16 %v1187, %v1186
        %v1191 = vpack.c.b16 %v1189, %v1188
        %v1195 = vsel %vm399, %v1170, 0
        %1197 = vmatprep.subr.bf16.mxu0 0
        %1198 = vmatpush1.bf16.msra.mxu0 %v1190
        %1199 = vmatprep.subr.bf16.mxu0 0
        %1200 = vmatpush1.bf16.msra.mxu0 %v1191
        %1201 = vmatprep.subr.bf16.mxu0 0
        %1202 = vmatpush1.bf16.msra.mxu0 0
        %1203 = vmatprep.subr.bf16.mxu0 0
        %1204 = vmatpush1.bf16.msra.mxu0 0
        %1205 = vmatprep.subr.bf16.mxu0 0
        %1206 = vmatpush1.bf16.msra.mxu0 0
        %1207 = vmatprep.subr.bf16.mxu0 0
        %1208 = vmatpush1.bf16.msra.mxu0 0
        %1209 = vmatprep.subr.bf16.mxu0 0
        %1210 = vmatpush1.bf16.msra.mxu0 0
        %1211 = vmatprep.subr.bf16.mxu0 0
        %1212 = vmatpush1.bf16.msra.mxu0 0
        %1213 = vmatprep.subr.bf16.mxu0 0
        %1214 = vmatpush1.bf16.msra.mxu0 0
        %1215 = vmatprep.subr.bf16.mxu0 0
        %1216 = vmatpush1.bf16.msra.mxu0 0
        %1217 = vmatprep.subr.bf16.mxu0 0
        %1218 = vmatpush1.bf16.msra.mxu0 0
        %1219 = vmatprep.subr.bf16.mxu0 0
        %1220 = vmatpush1.bf16.msra.mxu0 0
        %1221 = vmatprep.subr.bf16.mxu0 0
        %1222 = vmatpush1.bf16.msra.mxu0 0
        %1223 = vmatprep.subr.bf16.mxu0 0
        %1224 = vmatpush1.bf16.msra.mxu0 0
        %1225 = vmatprep.subr.bf16.mxu0 0
        %1226 = vmatpush1.bf16.msra.mxu0 0
        %1227 = vmatprep.subr.bf16.mxu0 0
        %1228 = vmatpush1.bf16.msra.mxu0 0
        %1229 = vmatprep.mubr.bf16.mxu0 0
        %1230 = vmatmul.mubr.bf16.gmra.mrb[0].mxu0 %v1195
        %v1231 = vpop.f32.mrb[0].mxu0
        %v1232 = vadd.f32 %v1180, %v1231
        %v1233 = vpop.f32.mrb[0].mxu0
        %v1234 = vpop.f32.mrb[0].mxu0
        %v1235 = vpop.f32.mrb[0].mxu0
        %1236 = vdwg.mxu0
        %vm1237 = vcmask 123904
        %1238 = vst.msk [vmem:[%s382] sm:$0x3] %vm1237, %v1232
        %s1239 = sand.u32 %s269, 1
        %s1240 = scalar_lea.sflag [#allocation3], %s1239
        %s1241 = sand.u32 %s269, 1
        %s1242 = smul.addr %s1241, 2
        %s1243 = scalar_lea.vmem [#allocation2], %s1242
        // Predicated region
        $region65: #{attention_pool_2d.1} parent=63 // pred_check
          %p1244 = pneg %p279
        $region66: #{attention_pool_2d.1} parent=63 // pred_check_branch
          %1246 = sbr.rel (%p1244) target = $region68
        $region67: #{attention_pool_2d.1} parent=63 // pred_region
          %s1248 = ssub.s32 32, 32
          %1249 = vsyncadd %s1240, %s1248
          %s1250 = smul.addr %s25, 32
          %s1251 = scalar_lea.hbm %s11, %s1250
          %s1253 = sshll.u32 %s1243, 4
          %s1254 = int_to_ptr.vmem [resolvable:$true] %s1253
          %1256 = dma.vmem_to_hbm [thread:$0]  %s1254, 32, %s1251, %s1240
        $region68: #{attention_pool_2d.1} parent=63 // pred_fallthru
          _
      $region64: #{attention_pool_2d.1} parent=5 // pred_fallthru
        _
      %p1257 = scmp.le.s32.totalorder 2, %s20
      // Predicated region
      $region69: #{attention_pool_2d.1} parent=5 // pred_check
        %p1258 = pneg %p1257
      $region70: #{attention_pool_2d.1} parent=5 // pred_check_branch
        %1260 = sbr.rel (%p1258) target = $region72
      $region71: #{attention_pool_2d.1} parent=5 // pred_region
        %s1261 = ssub.s32 %s20, 2
        // Predicated region
        $region73: #{attention_pool_2d.1} parent=71 // pred_check
          %p1262 = pneg %p285
        $region74: #{attention_pool_2d.1} parent=71 // pred_check_branch
          %1264 = sbr.rel (%p1262) target = $region76
        $region75: #{attention_pool_2d.1} parent=71 // pred_region
          %s1265 = sand.u32 %s270, 1
          %s1266 = scalar_lea.sflag [#allocation3], %s1265
          %s1267 = sand.u32 %s270, 1
          %s1268 = smul.addr %s1267, 2
          %s1269 = scalar_lea.vmem [#allocation2], %s1268
          %1270 = dma.done %s1266, 32
        $region76: #{attention_pool_2d.1} parent=71 // pred_fallthru
          _
      $region72: #{attention_pool_2d.1} parent=5 // pred_fallthru
        _
    $region6: #{attention_pool_2d.1} parent=1 // loop_footer
      %s24 = sadd.s32 1, %s20
    $region7: #{attention_pool_2d.1} parent=1 // loop_footer_branch
      %19 = sbr.rel target = $region3
    $region8: #{attention_pool_2d.1} parent=1 // loop_exit
      _
    %1271 = vsyncpa [#allocation3], 1
    %s1272 = scalar_lea.sflag [#allocation3], 1
    %1273 = vsyncpa %s1272, 1

// kernel: attention_pool_2d.1
$region0: #{attention_pool_2d.1}
  #allocation0 [shape = 'u32[]', space=smem, size = 0x4, offset = 0x4, fixed_abs, tag = 'smem constant byte address 0x4 - core index']
  #allocation1 [shape = 'u32[144,128]{1,0:T(1,128)}', space=vmem, size = 0x12000, scoped, tag = 'internal scratch']
  %s0 = inlined_call_operand.vmem [shape: bf16[4,16,32], index: 0, kind: input, shape index: {}]
  %s1 = inlined_call_operand.vmem [shape: bf16[1,32], index: 1, kind: input, shape index: {}]
  %s2 = inlined_call_operand.vmem [shape: bf16[16,32], index: 2, kind: input, shape index: {}]
  %s3 = inlined_call_operand.vmem [shape: bf16[32,32], index: 3, kind: input, shape index: {}]
  %s4 = inlined_call_operand.vmem [shape: f32[1,32], index: 4, kind: input, shape index: {}]
  %s5 = inlined_call_operand.vmem [shape: bf16[32,64], index: 5, kind: input, shape index: {}]
  %s6 = inlined_call_operand.vmem [shape: f32[1,64], index: 6, kind: input, shape index: {}]
  %s7 = inlined_call_operand.vmem [shape: bf16[32,16], index: 7, kind: input, shape index: {}]
  %s8 = inlined_call_operand.vmem [shape: f32[1,16], index: 8, kind: input, shape index: {}]
  %s9 = inlined_call_operand.vmem [shape: f32[32,4], index: 9, kind: input, shape index: {}]
  %s10 = inlined_call_operand.vmem [shape: f32[4,32], index: 10, kind: input, shape index: {}]
  %s11 = inlined_call_operand.hbm [shape: f32[2,2,16], index: 11, kind: output, shape index: {}]
  %s12 = sld [smem:[#allocation0]]
  $region77: #{attention_pool_2d.1} parent=0
    _
  %s14 = ssub.s32 1, %s12
  %s15 = scalar_select 0, %s14, %s12
  $region1: #{attention_pool_2d.1} parent=0
    #allocation2 [shape = 'u8[2048]{0}', space=vmem, size = 0x800, scoped, tag = 'output window, operand 0']
    #allocation3 [shape = 's32[2]{0}', space=sflag, size = 0x8, scoped, tag = 'scoped memory for attention_pool_2d.1']
    %16 = vsyncpa [#allocation3], 0
    %s17 = scalar_lea.sflag [#allocation3], 1
    %18 = vsyncpa %s17, 0
    loop: start=0, step=1, limit=4
    $region2: #{attention_pool_2d.1} parent=1 // loop_pre_header
      _
    $region3: #{attention_pool_2d.1} parent=1 // loop_header
      %s20 = sphi 0, %s24
      %p21 = scmp.ge.s32.totalorder %s20, 4
      %s30 = sphi 0, %s32
      %s33 = sphi 0, %s30
      %s34 = sphi 0, %s33
      %s50 = sphi 0, %s34
      %s54 = sphi 0, %s54
      %s56 = sphi 0, %s54
      %s57 = sphi 0, %s56
      %s71 = sphi 0, %s57
      %s75 = sphi 0, %s75
      %s77 = sphi 0, %s75
      %s78 = sphi 0, %s77
      %s92 = sphi 0, %s78
      %s96 = sphi 0, %s96
      %s98 = sphi 0, %s96
      %s99 = sphi 0, %s98
      %s113 = sphi 0, %s99
      %s117 = sphi 0, %s117
      %s119 = sphi 0, %s117
      %s120 = sphi 0, %s119
      %s134 = sphi 0, %s120
      %s138 = sphi 0, %s138
      %s140 = sphi 0, %s138
      %s141 = sphi 0, %s140
      %s155 = sphi 0, %s141
      %s159 = sphi 0, %s159
      %s161 = sphi 0, %s159
      %s162 = sphi 0, %s161
      %s176 = sphi 0, %s162
      %s180 = sphi 0, %s180
      %s182 = sphi 0, %s180
      %s183 = sphi 0, %s182
      %s197 = sphi 0, %s183
      %s201 = sphi 0, %s201
      %s203 = sphi 0, %s201
      %s204 = sphi 0, %s203
      %s218 = sphi 0, %s204
      %s222 = sphi 0, %s222
      %s224 = sphi 0, %s222
      %s225 = sphi 0, %s224
      %s239 = sphi 0, %s225
      %s243 = sphi 0, %s243
      %s245 = sphi 0, %s243
      %s246 = sphi 0, %s245
      %s260 = sphi 0, %s246
      %s266 = sphi 0, %s268
      %s269 = sphi 0, %s266
      %s270 = sphi 0, %s269
      %s286 = sphi 0, %s270
    $region4: #{attention_pool_2d.1} parent=1 // loop_header_branch
      %23 = sbr.rel (%p21) target = $region8
    $region5: #{attention_pool_2d.1} parent=1 // loop_body
      %s25 = ssub.s32 %s20, 1
      %s26 = ssub.s32 %s20, 2
      %s27 = sadd.s32 %s20, 1
      %s28 = ssub.s32 %s20, %s27
      %p29 = scmp.eq.s32.totalorder %s28, 0
      %s31 = sadd.s32 %s30, 1
      %s32 = scalar_select %p29, %s30, %s31
      %p35 = pneg %p29
      %p36 = scmp.eq.s32.totalorder %s20, 1
      %p37 = por %p35, %p36
      %p38 = scmp.ne.s32.totalorder %s30, %s33
      %p39 = scmp.eq.s32.totalorder %s20, 0
      %p40 = por %p38, %p39
      %p41 = scmp.ne.s32.totalorder %s30, %s33
      %p42 = scmp.eq.s32.totalorder %s25, 1
      %p43 = por %p41, %p42
      %p44 = scmp.ne.s32.totalorder %s33, %s34
      %p45 = scmp.eq.s32.totalorder %s25, 0
      %p46 = por %p44, %p45
      %p47 = scmp.ne.s32.totalorder %s33, %s34
      %p48 = scmp.eq.s32.totalorder %s26, 1
      %p49 = por %p47, %p48
      %p51 = scmp.ne.s32.totalorder %s34, %s50
      %p52 = scmp.eq.s32.totalorder %s26, 0
      %p53 = por %p51, %p52
      %s55 = sadd.s32 %s54, 1
      %p58 = scmp.eq.s32.totalorder %s20, 1
      %p59 = scmp.ne.s32.totalorder %s54, %s56
      %p60 = scmp.eq.s32.totalorder %s20, 0
      %p61 = por %p59, %p60
      %p62 = scmp.ne.s32.totalorder %s54, %s56
      %p63 = scmp.eq.s32.totalorder %s25, 1
      %p64 = por %p62, %p63
      %p65 = scmp.ne.s32.totalorder %s56, %s57
      %p66 = scmp.eq.s32.totalorder %s25, 0
      %p67 = por %p65, %p66
      %p68 = scmp.ne.s32.totalorder %s56, %s57
      %p69 = scmp.eq.s32.totalorder %s26, 1
      %p70 = por %p68, %p69
      %p72 = scmp.ne.s32.totalorder %s57, %s71
      %p73 = scmp.eq.s32.totalorder %s26, 0
      %p74 = por %p72, %p73
      %s76 = sadd.s32 %s75, 1
      %p79 = scmp.eq.s32.totalorder %s20, 1
      %p80 = scmp.ne.s32.totalorder %s75, %s77
      %p81 = scmp.eq.s32.totalorder %s20, 0
      %p82 = por %p80, %p81
      %p83 = scmp.ne.s32.totalorder %s75, %s77
      %p84 = scmp.eq.s32.totalorder %s25, 1
      %p85 = por %p83, %p84
      %p86 = scmp.ne.s32.totalorder %s77, %s78
      %p87 = scmp.eq.s32.totalorder %s25, 0
      %p88 = por %p86, %p87
      %p89 = scmp.ne.s32.totalorder %s77, %s78
      %p90 = scmp.eq.s32.totalorder %s26, 1
      %p91 = por %p89, %p90
      %p93 = scmp.ne.s32.totalorder %s78, %s92
      %p94 = scmp.eq.s32.totalorder %s26, 0
      %p95 = por %p93, %p94
      %s97 = sadd.s32 %s96, 1
      %p100 = scmp.eq.s32.totalorder %s20, 1
      %p101 = scmp.ne.s32.totalorder %s96, %s98
      %p102 = scmp.eq.s32.totalorder %s20, 0
      %p103 = por %p101, %p102
      %p104 = scmp.ne.s32.totalorder %s96, %s98
      %p105 = scmp.eq.s32.totalorder %s25, 1
      %p106 = por %p104, %p105
      %p107 = scmp.ne.s32.totalorder %s98, %s99
      %p108 = scmp.eq.s32.totalorder %s25, 0
      %p109 = por %p107, %p108
      %p110 = scmp.ne.s32.totalorder %s98, %s99
      %p111 = scmp.eq.s32.totalorder %s26, 1
      %p112 = por %p110, %p111
      %p114 = scmp.ne.s32.totalorder %s99, %s113
      %p115 = scmp.eq.s32.totalorder %s26, 0
      %p116 = por %p114, %p115
      %s118 = sadd.s32 %s117, 1
      %p121 = scmp.eq.s32.totalorder %s20, 1
      %p122 = scmp.ne.s32.totalorder %s117, %s119
      %p123 = scmp.eq.s32.totalorder %s20, 0
      %p124 = por %p122, %p123
      %p125 = scmp.ne.s32.totalorder %s117, %s119
      %p126 = scmp.eq.s32.totalorder %s25, 1
      %p127 = por %p125, %p126
      %p128 = scmp.ne.s32.totalorder %s119, %s120
      %p129 = scmp.eq.s32.totalorder %s25, 0
      %p130 = por %p128, %p129
      %p131 = scmp.ne.s32.totalorder %s119, %s120
      %p132 = scmp.eq.s32.totalorder %s26, 1
      %p133 = por %p131, %p132
      %p135 = scmp.ne.s32.totalorder %s120, %s134
      %p136 = scmp.eq.s32.totalorder %s26, 0
      %p137 = por %p135, %p136
      %s139 = sadd.s32 %s138, 1
      %p142 = scmp.eq.s32.totalorder %s20, 1
      %p143 = scmp.ne.s32.totalorder %s138, %s140
      %p144 = scmp.eq.s32.totalorder %s20, 0
      %p145 = por %p143, %p144
      %p146 = scmp.ne.s32.totalorder %s138, %s140
      %p147 = scmp.eq.s32.totalorder %s25, 1
      %p148 = por %p146, %p147
      %p149 = scmp.ne.s32.totalorder %s140, %s141
      %p150 = scmp.eq.s32.totalorder %s25, 0
      %p151 = por %p149, %p150
      %p152 = scmp.ne.s32.totalorder %s140, %s141
      %p153 = scmp.eq.s32.totalorder %s26, 1
      %p154 = por %p152, %p153
      %p156 = scmp.ne.s32.totalorder %s141, %s155
      %p157 = scmp.eq.s32.totalorder %s26, 0
      %p158 = por %p156, %p157
      %s160 = sadd.s32 %s159, 1
      %p163 = scmp.eq.s32.totalorder %s20, 1
      %p164 = scmp.ne.s32.totalorder %s159, %s161
      %p165 = scmp.eq.s32.totalorder %s20, 0
      %p166 = por %p164, %p165
      %p167 = scmp.ne.s32.totalorder %s159, %s161
      %p168 = scmp.eq.s32.totalorder %s25, 1
      %p169 = por %p167, %p168
      %p170 = scmp.ne.s32.totalorder %s161, %s162
      %p171 = scmp.eq.s32.totalorder %s25, 0
      %p172 = por %p170, %p171
      %p173 = scmp.ne.s32.totalorder %s161, %s162
      %p174 = scmp.eq.s32.totalorder %s26, 1
      %p175 = por %p173, %p174
      %p177 = scmp.ne.s32.totalorder %s162, %s176
      %p178 = scmp.eq.s32.totalorder %s26, 0
      %p179 = por %p177, %p178
      %s181 = sadd.s32 %s180, 1
      %p184 = scmp.eq.s32.totalorder %s20, 1
      %p185 = scmp.ne.s32.totalorder %s180, %s182
      %p186 = scmp.eq.s32.totalorder %s20, 0
      %p187 = por %p185, %p186
      %p188 = scmp.ne.s32.totalorder %s180, %s182
      %p189 = scmp.eq.s32.totalorder %s25, 1
      %p190 = por %p188, %p189
      %p191 = scmp.ne.s32.totalorder %s182, %s183
      %p192 = scmp.eq.s32.totalorder %s25, 0
      %p193 = por %p191, %p192
      %p194 = scmp.ne.s32.totalorder %s182, %s183
      %p195 = scmp.eq.s32.totalorder %s26, 1
      %p196 = por %p194, %p195
      %p198 = scmp.ne.s32.totalorder %s183, %s197
      %p199 = scmp.eq.s32.totalorder %s26, 0
      %p200 = por %p198, %p199
      %s202 = sadd.s32 %s201, 1
      %p205 = scmp.eq.s32.totalorder %s20, 1
      %p206 = scmp.ne.s32.totalorder %s201, %s203
      %p207 = scmp.eq.s32.totalorder %s20, 0
      %p208 = por %p206, %p207
      %p209 = scmp.ne.s32.totalorder %s201, %s203
      %p210 = scmp.eq.s32.totalorder %s25, 1
      %p211 = por %p209, %p210
      %p212 = scmp.ne.s32.totalorder %s203, %s204
      %p213 = scmp.eq.s32.totalorder %s25, 0
      %p214 = por %p212, %p213
      %p215 = scmp.ne.s32.totalorder %s203, %s204
      %p216 = scmp.eq.s32.totalorder %s26, 1
      %p217 = por %p215, %p216
      %p219 = scmp.ne.s32.totalorder %s204, %s218
      %p220 = scmp.eq.s32.totalorder %s26, 0
      %p221 = por %p219, %p220
      %s223 = sadd.s32 %s222, 1
      %p226 = scmp.eq.s32.totalorder %s20, 1
      %p227 = scmp.ne.s32.totalorder %s222, %s224
      %p228 = scmp.eq.s32.totalorder %s20, 0
      %p229 = por %p227, %p228
      %p230 = scmp.ne.s32.totalorder %s222, %s224
      %p231 = scmp.eq.s32.totalorder %s25, 1
      %p232 = por %p230, %p231
      %p233 = scmp.ne.s32.totalorder %s224, %s225
      %p234 = scmp.eq.s32.totalorder %s25, 0
      %p235 = por %p233, %p234
      %p236 = scmp.ne.s32.totalorder %s224, %s225
      %p237 = scmp.eq.s32.totalorder %s26, 1
      %p238 = por %p236, %p237
      %p240 = scmp.ne.s32.totalorder %s225, %s239
      %p241 = scmp.eq.s32.totalorder %s26, 0
      %p242 = por %p240, %p241
      %s244 = sadd.s32 %s243, 1
      %p247 = scmp.eq.s32.totalorder %s20, 1
      %p248 = scmp.ne.s32.totalorder %s243, %s245
      %p249 = scmp.eq.s32.totalorder %s20, 0
      %p250 = por %p248, %p249
      %p251 = scmp.ne.s32.totalorder %s243, %s245
      %p252 = scmp.eq.s32.totalorder %s25, 1
      %p253 = por %p251, %p252
      %p254 = scmp.ne.s32.totalorder %s245, %s246
      %p255 = scmp.eq.s32.totalorder %s25, 0
      %p256 = por %p254, %p255
      %p257 = scmp.ne.s32.totalorder %s245, %s246
      %p258 = scmp.eq.s32.totalorder %s26, 1
      %p259 = por %p257, %p258
      %p261 = scmp.ne.s32.totalorder %s246, %s260
      %p262 = scmp.eq.s32.totalorder %s26, 0
      %p263 = por %p261, %p262
      %s264 = ssub.s32 %s20, %s27
      %p265 = scmp.eq.s32.totalorder %s264, 0
      %s267 = sadd.s32 %s266, 1
      %s268 = scalar_select %p265, %s266, %s267
      %p271 = pneg %p265
      %p272 = scmp.eq.s32.totalorder %s20, 1
      %p273 = por %p271, %p272
      %p274 = scmp.ne.s32.totalorder %s266, %s269
      %p275 = scmp.eq.s32.totalorder %s20, 0
      %p276 = por %p274, %p275
      %p277 = scmp.ne.s32.totalorder %s266, %s269
      %p278 = scmp.eq.s32.totalorder %s25, 1
      %p279 = por %p277, %p278
      %p280 = scmp.ne.s32.totalorder %s269, %s270
      %p281 = scmp.eq.s32.totalorder %s25, 0
      %p282 = por %p280, %p281
      %p283 = scmp.ne.s32.totalorder %s269, %s270
      %p284 = scmp.eq.s32.totalorder %s26, 1
      %p285 = por %p283, %p284
      %p287 = scmp.ne.s32.totalorder %s270, %s286
      %p288 = scmp.eq.s32.totalorder %s26, 0
      %p289 = por %p287, %p288
      %p290 = scmp.le.s32.totalorder 1, %s20
      %p291 = scmp.lt.s32.totalorder %s20, 3
      %p292 = pnand %p290, %p291
      %p293 = pneg %p292
      // Predicated region
      $region9: #{attention_pool_2d.1} parent=5 // pred_check
        _
      $region10: #{attention_pool_2d.1} parent=5 // pred_check_branch
        %295 = sbr.rel (%p292) target = $region12
      $region11: #{attention_pool_2d.1} parent=5 // pred_region
        %s296 = ssub.s32 %s20, 1
        // Predicated region
        $region13: #{attention_pool_2d.1} parent=11 // pred_check
          %p297 = pneg %p67
        $region14: #{attention_pool_2d.1} parent=11 // pred_check_branch
          %299 = sbr.rel (%p297) target = $region16
        $region15: #{attention_pool_2d.1} parent=11 // pred_region
          _
        $region16: #{attention_pool_2d.1} parent=11 // pred_fallthru
          _
        // Predicated region
        $region17: #{attention_pool_2d.1} parent=11 // pred_check
          %p300 = pneg %p88
        $region18: #{attention_pool_2d.1} parent=11 // pred_check_branch
          %302 = sbr.rel (%p300) target = $region20
        $region19: #{attention_pool_2d.1} parent=11 // pred_region
          _
        $region20: #{attention_pool_2d.1} parent=11 // pred_fallthru
          _
        // Predicated region
        $region21: #{attention_pool_2d.1} parent=11 // pred_check
          %p303 = pneg %p109
        $region22: #{attention_pool_2d.1} parent=11 // pred_check_branch
          %305 = sbr.rel (%p303) target = $region24
        $region23: #{attention_pool_2d.1} parent=11 // pred_region
          _
        $region24: #{attention_pool_2d.1} parent=11 // pred_fallthru
          _
        // Predicated region
        $region25: #{attention_pool_2d.1} parent=11 // pred_check
          %p306 = pneg %p130
        $region26: #{attention_pool_2d.1} parent=11 // pred_check_branch
          %308 = sbr.rel (%p306) target = $region28
        $region27: #{attention_pool_2d.1} parent=11 // pred_region
          _
        $region28: #{attention_pool_2d.1} parent=11 // pred_fallthru
          _
        // Predicated region
        $region29: #{attention_pool_2d.1} parent=11 // pred_check
          %p309 = pneg %p151
        $region30: #{attention_pool_2d.1} parent=11 // pred_check_branch
          %311 = sbr.rel (%p309) target = $region32
        $region31: #{attention_pool_2d.1} parent=11 // pred_region
          _
        $region32: #{attention_pool_2d.1} parent=11 // pred_fallthru
          _
        // Predicated region
        $region33: #{attention_pool_2d.1} parent=11 // pred_check
          %p312 = pneg %p172
        $region34: #{attention_pool_2d.1} parent=11 // pred_check_branch
          %314 = sbr.rel (%p312) target = $region36
        $region35: #{attention_pool_2d.1} parent=11 // pred_region
          _
        $region36: #{attention_pool_2d.1} parent=11 // pred_fallthru
          _
        // Predicated region
        $region37: #{attention_pool_2d.1} parent=11 // pred_check
          %p315 = pneg %p193
        $region38: #{attention_pool_2d.1} parent=11 // pred_check_branch
          %317 = sbr.rel (%p315) target = $region40
        $region39: #{attention_pool_2d.1} parent=11 // pred_region
          _
        $region40: #{attention_pool_2d.1} parent=11 // pred_fallthru
          _
        // Predicated region
        $region41: #{attention_pool_2d.1} parent=11 // pred_check
          %p318 = pneg %p214
        $region42: #{attention_pool_2d.1} parent=11 // pred_check_branch
          %320 = sbr.rel (%p318) target = $region44
        $region43: #{attention_pool_2d.1} parent=11 // pred_region
          _
        $region44: #{attention_pool_2d.1} parent=11 // pred_fallthru
          _
        // Predicated region
        $region45: #{attention_pool_2d.1} parent=11 // pred_check
          %p321 = pneg %p235
        $region46: #{attention_pool_2d.1} parent=11 // pred_check_branch
          %323 = sbr.rel (%p321) target = $region48
        $region47: #{attention_pool_2d.1} parent=11 // pred_region
          _
        $region48: #{attention_pool_2d.1} parent=11 // pred_fallthru
          _
        // Predicated region
        $region49: #{attention_pool_2d.1} parent=11 // pred_check
          %p324 = pneg %p256
        $region50: #{attention_pool_2d.1} parent=11 // pred_check_branch
          %326 = sbr.rel (%p324) target = $region52
        $region51: #{attention_pool_2d.1} parent=11 // pred_region
          _
        $region52: #{attention_pool_2d.1} parent=11 // pred_fallthru
          _
      $region12: #{attention_pool_2d.1} parent=5 // pred_fallthru
        _
      %p327 = scmp.lt.s32.totalorder %s20, 2
      // Predicated region
      $region53: #{attention_pool_2d.1} parent=5 // pred_check
        %p328 = pneg %p327
      $region54: #{attention_pool_2d.1} parent=5 // pred_check_branch
        %330 = sbr.rel (%p328) target = $region56
      $region55: #{attention_pool_2d.1} parent=5 // pred_region
        // Predicated region
        $region57: #{attention_pool_2d.1} parent=55 // pred_check
          %p331 = pneg %p40
        $region58: #{attention_pool_2d.1} parent=55 // pred_check_branch
          %333 = sbr.rel (%p331) target = $region60
        $region59: #{attention_pool_2d.1} parent=55 // pred_region
          %s334 = smul.u32 2, %s20
          %p335 = scmp.lt.s32.totalorder %s334, 3
          %s336 = scalar_select %p335, %s334, 3
          %s337 = smul.addr %s336, 2
          %s338 = smul.addr %s337, 4
          %s339 = scalar_lea.vmem %s0, %s338
          %s340 = smul.u32 2, %s20
        $region60: #{attention_pool_2d.1} parent=55 // pred_fallthru
          _
      $region56: #{attention_pool_2d.1} parent=5 // pred_fallthru
        _
      %p341 = scmp.le.s32.totalorder 1, %s20
      %p342 = scmp.lt.s32.totalorder %s20, 3
      %p343 = pnand %p341, %p342
      %p344 = pneg %p343
      // Predicated region
      $region61: #{attention_pool_2d.1} parent=5 // pred_check
        _
      $region62: #{attention_pool_2d.1} parent=5 // pred_check_branch
        %346 = sbr.rel (%p343) target = $region64
      $region63: #{attention_pool_2d.1} parent=5 // pred_region
        %s347 = ssub.s32 %s20, 1
        %s348 = smul.u32 2, %s25
        %p349 = scmp.lt.s32.totalorder %s348, 3
        %s350 = scalar_select %p349, %s348, 3
        %s351 = smul.addr %s350, 2
        %s352 = smul.addr %s351, 4
        %s353 = scalar_lea.vmem %s0, %s352
        %p354 = pneg %p46
        %p355 = pneg %p43
        %p356 = pneg %p67
        %p357 = pneg %p64
        %p358 = pneg %p88
        %p359 = pneg %p85
        %p360 = pneg %p109
        %p361 = pneg %p106
        %p362 = pneg %p130
        %p363 = pneg %p127
        %p364 = pneg %p151
        %p365 = pneg %p148
        %p366 = pneg %p172
        %p367 = pneg %p169
        %p368 = pneg %p193
        %p369 = pneg %p190
        %p370 = pneg %p214
        %p371 = pneg %p211
        %p372 = pneg %p235
        %p373 = pneg %p232
        %p374 = pneg %p256
        %p375 = pneg %p253
        %p376 = pneg %p282
        %p377 = pneg %p279
        %s378 = sand.u32 %s269, 1
        %s379 = scalar_lea.sflag [#allocation3], %s378
        %s380 = sand.u32 %s269, 1
        %s381 = smul.addr %s380, 2
        %s382 = scalar_lea.vmem [#allocation2], %s381
        %s383 = smul.u32 2, %s25
        %p384 = scmp.lt.s32.totalorder %s383, 3
        %s385 = scalar_select %p384, %s383, 3
        %s386 = smul.addr %s385, 2
        %s387 = smul.addr %s386, 4
        %s388 = scalar_lea.vmem %s0, %s387
        %s389 = smul.u32 2, %s25
        %v391 = vld [vmem:[%s388] sm:$0xf]
        %v392 = vld [vmem:[%s388 + $0x4] sm:$0xf]
        %v393 = vld [vmem:[%s388 + $0x8] sm:$0xf]
        %v394 = vld [vmem:[%s388 + $0xc] sm:$0xf]
        %v395 = vunpack.c.l.bf16 %v391
        %v396 = vunpack.c.l.bf16 %v392
        %v397 = vunpack.c.l.bf16 %v393
        %v398 = vunpack.c.l.bf16 %v394
        %vm399 = vcmask 261120
        %v400 = vsel %vm399, %v395, 0.0
        %v401 = vsel %vm399, %v396, 0.0
        %v402 = vadd.f32 %v400, %v401
        %v403 = vrot.slane %v402, 4
        %v404 = vadd.f32 %v402, %v403
        %v405 = vrot.slane %v404, 2
        %v406 = vadd.f32 %v404, %v405
        %v407 = vrot.slane %v406, 1
        %v408 = vadd.f32 %v406, %v407
        %v409 = vsel %vm399, %v397, 0.0
        %v410 = vsel %vm399, %v398, 0.0
        %v411 = vadd.f32 %v409, %v410
        %v412 = vrot.slane %v411, 4
        %v413 = vadd.f32 %v411, %v412
        %v414 = vrot.slane %v413, 2
        %v415 = vadd.f32 %v413, %v414
        %v416 = vrot.slane %v415, 1
        %v417 = vadd.f32 %v415, %v416
        %v418 = vmul.f32 %v408, 0.0625
        %v419 = vmul.f32 %v417, 0.0625
        %v420 = vld [vmem:[%s1] sm:$0x1]
        %v421 = vunpack.c.l.bf16 %v420
        %v422 = vlaneseq
        %v423 = vshrl.u32 %v422, 7
        %v424 = vsub.s32 0, %v423
        %v425 = vrot.slane %v421, %v424
        %v426 = vadd.f32 %v418, %v425
        %v427 = vadd.f32 %v419, %v425
        %v428 = vpack.c.bf16 %v426, %v426
        %v429 = vpack.c.bf16 %v427, %v427
        %v430 = vld [vmem:[%s2] sm:$0xf]
        %v431 = vld [vmem:[%s2 + $0x4] sm:$0xf]
        %v432 = vadd.bf16 %v391, %v430
        %v433 = vadd.bf16 %v392, %v431
        %v434 = vadd.bf16 %v393, %v430
        %v435 = vadd.bf16 %v394, %v431
        %v436 = vld [vmem:[%s3] sm:$0xf]
        %v437 = vld [vmem:[%s3 + $0x4] sm:$0xf]
        %v438 = vld [vmem:[%s3 + $0x8] sm:$0xf]
        %v439 = vld [vmem:[%s3 + $0xc] sm:$0xf]
        %v440 = vld [vmem:[%s4] sm:$0x1]
        %v442 = vlaneseq
        %v443 = vshrl.u32 %v442, 7
        %v444 = vsub.s32 0, %v443
        %v445 = vrot.slane %v440, %v444
        %v449 = vunpack.c.l.b16 %v428
        %v450 = vunpack.c.l.b16 %v429
        %v451 = vrot.slane %v450, 7
        %vm452 = vcmask 1041409
        %v453 = vsel %vm452, %v451, %v449
        %v454 = vpack.c.b16 %v453, %v453
        %v459 = vunpack.c.l.b16 %v436
        %v460 = vunpack.c.l.b16 %v437
        %v461 = vunpack.c.l.b16 %v438
        %v462 = vunpack.c.l.b16 %v439
        %v463 = vpack.c.b16 %v460, %v459
        %v464 = vpack.c.b16 %v462, %v461
        %v468 = vsel %vm399, %v454, 0
        %470 = vmatprep.subr.bf16.mxu0 0
        %471 = vmatpush1.bf16.msra.mxu0 %v463
        %472 = vmatprep.subr.bf16.mxu0 0
        %473 = vmatpush1.bf16.msra.mxu0 %v464
        %474 = vmatprep.subr.bf16.mxu0 0
        %475 = vmatpush1.bf16.msra.mxu0 0
        %476 = vmatprep.subr.bf16.mxu0 0
        %477 = vmatpush1.bf16.msra.mxu0 0
        %478 = vmatprep.subr.bf16.mxu0 0
        %479 = vmatpush1.bf16.msra.mxu0 0
        %480 = vmatprep.subr.bf16.mxu0 0
        %481 = vmatpush1.bf16.msra.mxu0 0
        %482 = vmatprep.subr.bf16.mxu0 0
        %483 = vmatpush1.bf16.msra.mxu0 0
        %484 = vmatprep.subr.bf16.mxu0 0
        %485 = vmatpush1.bf16.msra.mxu0 0
        %486 = vmatprep.subr.bf16.mxu0 0
        %487 = vmatpush1.bf16.msra.mxu0 0
        %488 = vmatprep.subr.bf16.mxu0 0
        %489 = vmatpush1.bf16.msra.mxu0 0
        %490 = vmatprep.subr.bf16.mxu0 0
        %491 = vmatpush1.bf16.msra.mxu0 0
        %492 = vmatprep.subr.bf16.mxu0 0
        %493 = vmatpush1.bf16.msra.mxu0 0
        %494 = vmatprep.subr.bf16.mxu0 0
        %495 = vmatpush1.bf16.msra.mxu0 0
        %496 = vmatprep.subr.bf16.mxu0 0
        %497 = vmatpush1.bf16.msra.mxu0 0
        %498 = vmatprep.subr.bf16.mxu0 0
        %499 = vmatpush1.bf16.msra.mxu0 0
        %500 = vmatprep.subr.bf16.mxu0 0
        %501 = vmatpush1.bf16.msra.mxu0 0
        %502 = vmatprep.mubr.bf16.mxu0 0
        %503 = vmatmul.mubr.bf16.gmra.mrb[0].mxu0 %v468
        %v504 = vpop.f32.mrb[0].mxu0
        %v505 = vadd.f32 %v445, %v504
        %v506 = vpop.f32.mrb[0].mxu0
        %v507 = vpop.f32.mrb[0].mxu0
        %v508 = vpop.f32.mrb[0].mxu0
        %509 = vdwg.mxu0
        %v510 = vld [vmem:[%s5] sm:$0xf]
        %v511 = vld [vmem:[%s5 + $0x4] sm:$0xf]
        %v512 = vld [vmem:[%s5 + $0x8] sm:$0xf]
        %v513 = vld [vmem:[%s5 + $0xc] sm:$0xf]
        %v514 = vld [vmem:[%s6] sm:$0x1]
        %v516 = vlaneseq
        %v517 = vshrl.u32 %v516, 7
        %v518 = vsub.s32 0, %v517
        %v519 = vrot.slane %v514, %v518
        %v525 = vunpack.c.l.b16 %v510
        %v526 = vunpack.c.l.b16 %v511
        %v527 = vunpack.c.l.b16 %v512
        %v528 = vunpack.c.l.b16 %v513
        %v529 = vpack.c.b16 %v526, %v525
        %v530 = vpack.c.b16 %v528, %v527
        %533 = vmatprep.subr.bf16.mxu0 0
        %534 = vmatpush1.bf16.msra.mxu0 %v529
        %535 = vmatprep.subr.bf16.mxu0 0
        %536 = vmatpush1.bf16.msra.mxu0 %v530
        %537 = vmatprep.subr.bf16.mxu0 0
        %538 = vmatpush1.bf16.msra.mxu0 0
        %539 = vmatprep.subr.bf16.mxu0 0
        %540 = vmatpush1.bf16.msra.mxu0 0
        %541 = vmatprep.subr.bf16.mxu0 0
        %542 = vmatpush1.bf16.msra.mxu0 0
        %543 = vmatprep.subr.bf16.mxu0 0
        %544 = vmatpush1.bf16.msra.mxu0 0
        %545 = vmatprep.subr.bf16.mxu0 0
        %546 = vmatpush1.bf16.msra.mxu0 0
        %547 = vmatprep.subr.bf16.mxu0 0
        %548 = vmatpush1.bf16.msra.mxu0 0
        %549 = vmatprep.subr.bf16.mxu0 0
        %550 = vmatpush1.bf16.msra.mxu0 0
        %551 = vmatprep.subr.bf16.mxu0 0
        %552 = vmatpush1.bf16.msra.mxu0 0
        %553 = vmatprep.subr.bf16.mxu0 0
        %554 = vmatpush1.bf16.msra.mxu0 0
        %555 = vmatprep.subr.bf16.mxu0 0
        %556 = vmatpush1.bf16.msra.mxu0 0
        %557 = vmatprep.subr.bf16.mxu0 0
        %558 = vmatpush1.bf16.msra.mxu0 0
        %559 = vmatprep.subr.bf16.mxu0 0
        %560 = vmatpush1.bf16.msra.mxu0 0
        %561 = vmatprep.subr.bf16.mxu0 0
        %562 = vmatpush1.bf16.msra.mxu0 0
        %563 = vmatprep.subr.bf16.mxu0 0
        %564 = vmatpush1.bf16.msra.mxu0 0
        %565 = vmatprep.mubr.bf16.mxu0 0
        %566 = vmatmul.mubr.bf16.gmra.mrb[0].mxu0 %v468
        %v567 = vpop.f32.mrb[0].mxu0
        %v568 = vadd.f32 %v519, %v567
        %v569 = vpop.f32.mrb[0].mxu0
        %v570 = vpop.f32.mrb[0].mxu0
        %v571 = vpop.f32.mrb[0].mxu0
        %572 = vdwg.mxu0
        %v577 = vunpack.c.l.b16 %v432
        %v578 = vunpack.c.l.b16 %v433
        %v579 = vunpack.c.l.b16 %v434
        %v580 = vunpack.c.l.b16 %v435
        %v581 = vpack.c.b16 %v578, %v577
        %v582 = vpack.c.b16 %v580, %v579
        %v584 = vsel %vm399, %v581, 0
        %v587 = vsel %vm399, %v582, 0
        %589 = vmatprep.subr.bf16.mxu0 0
        %590 = vmatpush1.bf16.msra.mxu0 %v529
        %591 = vmatprep.subr.bf16.mxu0 0
        %592 = vmatpush1.bf16.msra.mxu0 %v530
        %593 = vmatprep.subr.bf16.mxu0 0
        %594 = vmatpush1.bf16.msra.mxu0 0
        %595 = vmatprep.subr.bf16.mxu0 0
        %596 = vmatpush1.bf16.msra.mxu0 0
        %597 = vmatprep.subr.bf16.mxu0 0
        %598 = vmatpush1.bf16.msra.mxu0 0
        %599 = vmatprep.subr.bf16.mxu0 0
        %600 = vmatpush1.bf16.msra.mxu0 0
        %601 = vmatprep.subr.bf16.mxu0 0
        %602 = vmatpush1.bf16.msra.mxu0 0
        %603 = vmatprep.subr.bf16.mxu0 0
        %604 = vmatpush1.bf16.msra.mxu0 0
        %605 = vmatprep.subr.bf16.mxu0 0
        %606 = vmatpush1.bf16.msra.mxu0 0
        %607 = vmatprep.subr.bf16.mxu0 0
        %608 = vmatpush1.bf16.msra.mxu0 0
        %609 = vmatprep.subr.bf16.mxu0 0
        %610 = vmatpush1.bf16.msra.mxu0 0
        %611 = vmatprep.subr.bf16.mxu0 0
        %612 = vmatpush1.bf16.msra.mxu0 0
        %613 = vmatprep.subr.bf16.mxu0 0
        %614 = vmatpush1.bf16.msra.mxu0 0
        %615 = vmatprep.subr.bf16.mxu0 0
        %616 = vmatpush1.bf16.msra.mxu0 0
        %617 = vmatprep.subr.bf16.mxu0 0
        %618 = vmatpush1.bf16.msra.mxu0 0
        %619 = vmatprep.subr.bf16.mxu0 0
        %620 = vmatpush1.bf16.msra.mxu0 0
        %621 = vmatprep.mubr.bf16.mxu0 0
        %622 = vmatmul.mubr.bf16.gmra.mrb[0].mxu0 %v584
        %v623 = vpop.f32.mrb[0].mxu0
        %v624 = vadd.f32 %v519, %v623
        %v625 = vpop.f32.mrb[0].mxu0
        %v626 = vpop.f32.mrb[0].mxu0
        %v627 = vadd.f32 %v519, %v626
        %v628 = vpop.f32.mrb[0].mxu0
        %629 = vmatprep.mubr.bf16.mxu0 0
        %630 = vmatmul.mubr.bf16.gmra.mrb[0].mxu0 %v587
        %v631 = vpop.f32.mrb[0].mxu0
        %v632 = vadd.f32 %v519, %v631
        %v633 = vpop.f32.mrb[0].mxu0
        %v634 = vpop.f32.mrb[0].mxu0
        %v635 = vadd.f32 %v519, %v634
        %v636 = vpop.f32.mrb[0].mxu0
        %637 = vdwg.mxu0
        %v638 = vld [vmem:[%s9] sm:$0xff]
        %v639 = vld [vmem:[%s9 + $0x8] sm:$0xff]
        %v640 = vld [vmem:[%s9 + $0x10] sm:$0xff]
        %v641 = vld [vmem:[%s9 + $0x18] sm:$0xff]
        %v642 = vmul.f32 %v568, %v505
        %v644 = vsel %vm399, %v642, 0
        %646 = vmatprep.subr.mxu0 0.0
        %647 = vmatpush1.msra.mxu0 %v638
        %648 = vmatprep.subr.mxu0 0.0
        %649 = vmatpush1.msra.mxu0 %v639
        %650 = vmatprep.subr.mxu0 0.0
        %651 = vmatpush1.msra.mxu0 %v640
        %652 = vmatprep.subr.mxu0 0.0
        %653 = vmatpush1.msra.mxu0 %v641
        %654 = vmatprep.subr.mxu0 0.0
        %655 = vmatpush1.msra.mxu0 0.0
        %656 = vmatprep.subr.mxu0 0.0
        %657 = vmatpush1.msra.mxu0 0.0
        %658 = vmatprep.subr.mxu0 0.0
        %659 = vmatpush1.msra.mxu0 0.0
        %660 = vmatprep.subr.mxu0 0.0
        %661 = vmatpush1.msra.mxu0 0.0
        %662 = vmatprep.subr.mxu0 0.0
        %663 = vmatpush1.msra.mxu0 0.0
        %664 = vmatprep.subr.mxu0 0.0
        %665 = vmatpush1.msra.mxu0 0.0
        %666 = vmatprep.subr.mxu0 0.0
        %667 = vmatpush1.msra.mxu0 0.0
        %668 = vmatprep.subr.mxu0 0.0
        %669 = vmatpush1.msra.mxu0 0.0
        %670 = vmatprep.subr.mxu0 0.0
        %671 = vmatpush1.msra.mxu0 0.0
        %672 = vmatprep.subr.mxu0 0.0
        %673 = vmatpush1.msra.mxu0 0.0
        %674 = vmatprep.subr.mxu0 0.0
        %675 = vmatpush1.msra.mxu0 0.0
        %676 = vmatprep.subr.mxu0 0.0
        %677 = vmatpush1.msra.mxu0 0.0
        %678 = vmatprep.subr.mxu0 0.0
        %679 = vmatpush1.msra.mxu0 0.0
        %680 = vmatprep.subr.mxu0 0.0
        %681 = vmatpush1.msra.mxu0 0.0
        %682 = vmatprep.subr.mxu0 0.0
        %683 = vmatpush1.msra.mxu0 0.0
        %684 = vmatprep.subr.mxu0 0.0
        %685 = vmatpush1.msra.mxu0 0.0
        %686 = vmatprep.subr.mxu0 0.0
        %687 = vmatpush1.msra.mxu0 0.0
        %688 = vmatprep.subr.mxu0 0.0
        %689 = vmatpush1.msra.mxu0 0.0
        %690 = vmatprep.subr.mxu0 0.0
        %691 = vmatpush1.msra.mxu0 0.0
        %692 = vmatprep.subr.mxu0 0.0
        %693 = vmatpush1.msra.mxu0 0.0
        %694 = vmatprep.subr.mxu0 0.0
        %695 = vmatpush1.msra.mxu0 0.0
        %696 = vmatprep.subr.mxu0 0.0
        %697 = vmatpush1.msra.mxu0 0.0
        %698 = vmatprep.subr.mxu0 0.0
        %699 = vmatpush1.msra.mxu0 0.0
        %700 = vmatprep.subr.mxu0 0.0
        %701 = vmatpush1.msra.mxu0 0.0
        %702 = vmatprep.subr.mxu0 0.0
        %703 = vmatpush1.msra.mxu0 0.0
        %704 = vmatprep.subr.mxu0 0.0
        %705 = vmatpush1.msra.mxu0 0.0
        %706 = vmatprep.subr.mxu0 0.0
        %707 = vmatpush1.msra.mxu0 0.0
        %708 = vmatprep.subr.mxu0 0.0
        %709 = vmatpush1.msra.mxu0 0.0
        %710 = vmatprep.mubr.f32.mxu0 0.0
        %711 = vmatmul.mubr.f32.gmra.mrb[0].mxu0 %v644
        %v712 = vpop.f32.mrb[0].mxu0
        %v713 = vadd.f32 0.0, %v712
        %v714 = vpop.f32.mrb[0].mxu0
        %715 = vdwg.mxu0
        %v718 = vunpack.c.l.s4 1966171168
        %v719 = vunpack.c.0.s8 %v718
        %v720 = vlaneseq
        %v721 = vshrl.u32 %v720, 7
        %v722 = vsub.s32 %v719, %v721
        %v723 = vrot.slane %v505, %v722
        %v724 = vcombine.high %v723, %v723
        %v726 = vunpack.c.l.s4 1966171168
        %v727 = vunpack.c.0.s8 %v726
        %v728 = vlaneseq
        %v729 = vshrl.u32 %v728, 7
        %v730 = vsub.s32 %v727, %v729
        %v731 = vrot.slane %v723, %v730
        %v733 = vunpack.c.l.s4 1966171168
        %v734 = vunpack.c.0.s8 %v733
        %v735 = vlaneseq
        %v736 = vshrl.u32 %v735, 7
        %v737 = vsub.s32 %v734, %v736
        %v738 = vrot.slane %v724, %v737
        %v739 = vlaneseq
        %v740 = vshrl.u32 %v739, 7
        %v741 = vsub.s32 0, %v740
        %v742 = vrot.slane %v731, %v741
        %v743 = vlaneseq
        %v744 = vshrl.u32 %v743, 7
        %v745 = vsub.s32 0, %v744
        %v746 = vrot.slane %v738, %v745
        %v749 = vmul.f32 %v624, %v742
        %v750 = vmul.f32 %v627, %v742
        %v751 = vmul.f32 %v632, %v746
        %v752 = vmul.f32 %v635, %v746
        %v754 = vsel %vm399, %v749, 0
        %v757 = vsel %vm399, %v750, 0
        %v760 = vsel %vm399, %v751, 0
        %v763 = vsel %vm399, %v752, 0
        %765 = vmatprep.subr.mxu0 0.0
        %766 = vmatpush1.msra.mxu0 %v638
        %767 = vmatprep.subr.mxu0 0.0
        %768 = vmatpush1.msra.mxu0 %v639
        %769 = vmatprep.subr.mxu0 0.0
        %770 = vmatpush1.msra.mxu0 %v640
        %771 = vmatprep.subr.mxu0 0.0
        %772 = vmatpush1.msra.mxu0 %v641
        %773 = vmatprep.subr.mxu0 0.0
        %774 = vmatpush1.msra.mxu0 0.0
        %775 = vmatprep.subr.mxu0 0.0
        %776 = vmatpush1.msra.mxu0 0.0
        %777 = vmatprep.subr.mxu0 0.0
        %778 = vmatpush1.msra.mxu0 0.0
        %779 = vmatprep.subr.mxu0 0.0
        %780 = vmatpush1.msra.mxu0 0.0
        %781 = vmatprep.subr.mxu0 0.0
        %782 = vmatpush1.msra.mxu0 0.0
        %783 = vmatprep.subr.mxu0 0.0
        %784 = vmatpush1.msra.mxu0 0.0
        %785 = vmatprep.subr.mxu0 0.0
        %786 = vmatpush1.msra.mxu0 0.0
        %787 = vmatprep.subr.mxu0 0.0
        %788 = vmatpush1.msra.mxu0 0.0
        %789 = vmatprep.subr.mxu0 0.0
        %790 = vmatpush1.msra.mxu0 0.0
        %791 = vmatprep.subr.mxu0 0.0
        %792 = vmatpush1.msra.mxu0 0.0
        %793 = vmatprep.subr.mxu0 0.0
        %794 = vmatpush1.msra.mxu0 0.0
        %795 = vmatprep.subr.mxu0 0.0
        %796 = vmatpush1.msra.mxu0 0.0
        %797 = vmatprep.subr.mxu0 0.0
        %798 = vmatpush1.msra.mxu0 0.0
        %799 = vmatprep.subr.mxu0 0.0
        %800 = vmatpush1.msra.mxu0 0.0
        %801 = vmatprep.subr.mxu0 0.0
        %802 = vmatpush1.msra.mxu0 0.0
        %803 = vmatprep.subr.mxu0 0.0
        %804 = vmatpush1.msra.mxu0 0.0
        %805 = vmatprep.subr.mxu0 0.0
        %806 = vmatpush1.msra.mxu0 0.0
        %807 = vmatprep.subr.mxu0 0.0
        %808 = vmatpush1.msra.mxu0 0.0
        %809 = vmatprep.subr.mxu0 0.0
        %810 = vmatpush1.msra.mxu0 0.0
        %811 = vmatprep.subr.mxu0 0.0
        %812 = vmatpush1.msra.mxu0 0.0
        %813 = vmatprep.subr.mxu0 0.0
        %814 = vmatpush1.msra.mxu0 0.0
        %815 = vmatprep.subr.mxu0 0.0
        %816 = vmatpush1.msra.mxu0 0.0
        %817 = vmatprep.subr.mxu0 0.0
        %818 = vmatpush1.msra.mxu0 0.0
        %819 = vmatprep.subr.mxu0 0.0
        %820 = vmatpush1.msra.mxu0 0.0
        %821 = vmatprep.subr.mxu0 0.0
        %822 = vmatpush1.msra.mxu0 0.0
        %823 = vmatprep.subr.mxu0 0.0
        %824 = vmatpush1.msra.mxu0 0.0
        %825 = vmatprep.subr.mxu0 0.0
        %826 = vmatpush1.msra.mxu0 0.0
        %827 = vmatprep.subr.mxu0 0.0
        %828 = vmatpush1.msra.mxu0 0.0
        %829 = vmatprep.mubr.f32.mxu0 0.0
        %830 = vmatmul.mubr.f32.gmra.mrb[0].mxu0 %v754
        %v831 = vpop.f32.mrb[0].mxu0
        %v832 = vadd.f32 0.0, %v831
        %v833 = vpop.f32.mrb[0].mxu0
        %834 = vmatprep.mubr.f32.mxu0 0.0
        %835 = vmatmul.mubr.f32.gmra.mrb[0].mxu0 %v757
        %v836 = vpop.f32.mrb[0].mxu0
        %v837 = vadd.f32 0.0, %v836
        %v838 = vpop.f32.mrb[0].mxu0
        %839 = vmatprep.mubr.f32.mxu0 0.0
        %840 = vmatmul.mubr.f32.gmra.mrb[0].mxu0 %v760
        %v841 = vpop.f32.mrb[0].mxu0
        %v842 = vadd.f32 0.0, %v841
        %v843 = vpop.f32.mrb[0].mxu0
        %844 = vmatprep.mubr.f32.mxu0 0.0
        %845 = vmatmul.mubr.f32.gmra.mrb[0].mxu0 %v763
        %v846 = vpop.f32.mrb[0].mxu0
        %v847 = vadd.f32 0.0, %v846
        %v848 = vpop.f32.mrb[0].mxu0
        %849 = vdwg.mxu0
        %vm850 = vcmask 31744
        %v851 = vsel %vm850, %v832, -inf
        %v852 = vsel %vm850, %v837, -inf
        %v853 = vmax.f32 %v851, %v852
        %v854 = vrot.slane %v853, 4
        %v855 = vmax.f32 %v853, %v854
        %v856 = vrot.slane %v855, 2
        %v857 = vmax.f32 %v855, %v856
        %v858 = vrot.slane %v857, 1
        %v859 = vmax.f32 %v857, %v858
        %v860 = vsel %vm850, %v842, -inf
        %v861 = vsel %vm850, %v847, -inf
        %v862 = vmax.f32 %v860, %v861
        %v863 = vrot.slane %v862, 4
        %v864 = vmax.f32 %v862, %v863
        %v865 = vrot.slane %v864, 2
        %v866 = vmax.f32 %v864, %v865
        %v867 = vrot.slane %v866, 1
        %v868 = vmax.f32 %v866, %v867
        %v870 = vrot.slane %v713, 1
        %v873 = vmax.f32 %v859, %v713
        %v874 = vmax.f32 %v868, %v870
        %v877 = vrot.slane %v874, 7
        %v878 = vsel %vm452, %v877, %v873
        %v880 = vsub.f32 %v713, %v878
        %v881 = vmul.f32 %v880, 1.442695
        %v882 = vpow.pop %v881
        %v883 = vlaneseq
        %v884 = vshrl.u32 %v883, 7
        %v885 = vsub.s32 0, %v884
        %v886 = vrot.slane %v873, %v885
        %v887 = vlaneseq
        %v888 = vshrl.u32 %v887, 7
        %v889 = vsub.s32 0, %v888
        %v890 = vrot.slane %v874, %v889
        %v891 = vsub.f32 %v832, %v886
        %v892 = vsub.f32 %v837, %v886
        %v893 = vsub.f32 %v842, %v890
        %v894 = vsub.f32 %v847, %v890
        %v895 = vmul.f32 %v891, 1.442695
        %v896 = vpow.pop %v895
        %v897 = vmul.f32 %v892, 1.442695
        %v898 = vpow.pop %v897
        %v899 = vmul.f32 %v893, 1.442695
        %v900 = vpow.pop %v899
        %v901 = vmul.f32 %v894, 1.442695
        %v902 = vpow.pop %v901
        %v903 = vsel %vm850, %v896, 0.0
        %v904 = vsel %vm850, %v898, 0.0
        %v905 = vadd.f32 %v903, %v904
        %v906 = vrot.slane %v905, 4
        %v907 = vadd.f32 %v905, %v906
        %v908 = vrot.slane %v907, 2
        %v909 = vadd.f32 %v907, %v908
        %v910 = vrot.slane %v909, 1
        %v911 = vadd.f32 %v909, %v910
        %v912 = vsel %vm850, %v900, 0.0
        %v913 = vsel %vm850, %v902, 0.0
        %v914 = vadd.f32 %v912, %v913
        %v915 = vrot.slane %v914, 4
        %v916 = vadd.f32 %v914, %v915
        %v917 = vrot.slane %v916, 2
        %v918 = vadd.f32 %v916, %v917
        %v919 = vrot.slane %v918, 1
        %v920 = vadd.f32 %v918, %v919
        %v922 = vrot.slane %v882, 1
        %v925 = vadd.f32 %v911, %v882
        %v926 = vadd.f32 %v920, %v922
        %v927 = vrcp.pop %v925
        %v928 = vrcp.pop %v926
        %v931 = vrot.slane %v928, 7
        %v932 = vsel %vm452, %v931, %v927
        %v934 = vmul.f32 %v882, %v932
        %v935 = vlaneseq
        %v936 = vshrl.u32 %v935, 7
        %v937 = vsub.s32 0, %v936
        %v938 = vrot.slane %v927, %v937
        %v939 = vlaneseq
        %v940 = vshrl.u32 %v939, 7
        %v941 = vsub.s32 0, %v940
        %v942 = vrot.slane %v928, %v941
        %v943 = vmul.f32 %v896, %v938
        %v944 = vmul.f32 %v898, %v938
        %v945 = vmul.f32 %v900, %v942
        %v946 = vmul.f32 %v902, %v942
        %v947 = vld [vmem:[%s10] sm:$0xf]
        %v949 = vsel %vm850, %v934, 0
        %vm951 = vcmask 1043456
        %v953 = vsel %vm951, %v947, 0
        %955 = vmatprep.subr.mxu0 0.0
        %956 = vmatpush1.msra.mxu0 %v953
        %957 = vmatprep.subr.mxu0 0.0
        %958 = vmatpush1.msra.mxu0 0.0
        %959 = vmatprep.subr.mxu0 0.0
        %960 = vmatpush1.msra.mxu0 0.0
        %961 = vmatprep.subr.mxu0 0.0
        %962 = vmatpush1.msra.mxu0 0.0
        %963 = vmatprep.subr.mxu0 0.0
        %964 = vmatpush1.msra.mxu0 0.0
        %965 = vmatprep.subr.mxu0 0.0
        %966 = vmatpush1.msra.mxu0 0.0
        %967 = vmatprep.subr.mxu0 0.0
        %968 = vmatpush1.msra.mxu0 0.0
        %969 = vmatprep.subr.mxu0 0.0
        %970 = vmatpush1.msra.mxu0 0.0
        %971 = vmatprep.subr.mxu0 0.0
        %972 = vmatpush1.msra.mxu0 0.0
        %973 = vmatprep.subr.mxu0 0.0
        %974 = vmatpush1.msra.mxu0 0.0
        %975 = vmatprep.subr.mxu0 0.0
        %976 = vmatpush1.msra.mxu0 0.0
        %977 = vmatprep.subr.mxu0 0.0
        %978 = vmatpush1.msra.mxu0 0.0
        %979 = vmatprep.subr.mxu0 0.0
        %980 = vmatpush1.msra.mxu0 0.0
        %981 = vmatprep.subr.mxu0 0.0
        %982 = vmatpush1.msra.mxu0 0.0
        %983 = vmatprep.subr.mxu0 0.0
        %984 = vmatpush1.msra.mxu0 0.0
        %985 = vmatprep.subr.mxu0 0.0
        %986 = vmatpush1.msra.mxu0 0.0
        %987 = vmatprep.subr.mxu0 0.0
        %988 = vmatpush1.msra.mxu0 0.0
        %989 = vmatprep.subr.mxu0 0.0
        %990 = vmatpush1.msra.mxu0 0.0
        %991 = vmatprep.subr.mxu0 0.0
        %992 = vmatpush1.msra.mxu0 0.0
        %993 = vmatprep.subr.mxu0 0.0
        %994 = vmatpush1.msra.mxu0 0.0
        %995 = vmatprep.subr.mxu0 0.0
        %996 = vmatpush1.msra.mxu0 0.0
        %997 = vmatprep.subr.mxu0 0.0
        %998 = vmatpush1.msra.mxu0 0.0
        %999 = vmatprep.subr.mxu0 0.0
        %1000 = vmatpush1.msra.mxu0 0.0
        %1001 = vmatprep.subr.mxu0 0.0
        %1002 = vmatpush1.msra.mxu0 0.0
        %1003 = vmatprep.subr.mxu0 0.0
        %1004 = vmatpush1.msra.mxu0 0.0
        %1005 = vmatprep.subr.mxu0 0.0
        %1006 = vmatpush1.msra.mxu0 0.0
        %1007 = vmatprep.subr.mxu0 0.0
        %1008 = vmatpush1.msra.mxu0 0.0
        %1009 = vmatprep.subr.mxu0 0.0
        %1010 = vmatpush1.msra.mxu0 0.0
        %1011 = vmatprep.subr.mxu0 0.0
        %1012 = vmatpush1.msra.mxu0 0.0
        %1013 = vmatprep.subr.mxu0 0.0
        %1014 = vmatpush1.msra.mxu0 0.0
        %1015 = vmatprep.subr.mxu0 0.0
        %1016 = vmatpush1.msra.mxu0 0.0
        %1017 = vmatprep.subr.mxu0 0.0
        %1018 = vmatpush1.msra.mxu0 0.0
        %1019 = vmatprep.mubr.f32.mxu0 0.0
        %1020 = vmatmul.mubr.f32.gmra.mrb[0].mxu0 %v949
        %v1021 = vpop.f32.mrb[0].mxu0
        %v1022 = vadd.f32 0.0, %v1021
        %v1023 = vpop.f32.mrb[0].mxu0
        %1024 = vdwg.mxu0
        %v1026 = vsel %vm850, %v943, 0
        %v1029 = vsel %vm850, %v944, 0
        %v1032 = vsel %vm850, %v945, 0
        %v1035 = vsel %vm850, %v946, 0
        %1037 = vmatprep.subr.mxu0 0.0
        %1038 = vmatpush1.msra.mxu0 %v953
        %1039 = vmatprep.subr.mxu0 0.0
        %1040 = vmatpush1.msra.mxu0 0.0
        %1041 = vmatprep.subr.mxu0 0.0
        %1042 = vmatpush1.msra.mxu0 0.0
        %1043 = vmatprep.subr.mxu0 0.0
        %1044 = vmatpush1.msra.mxu0 0.0
        %1045 = vmatprep.subr.mxu0 0.0
        %1046 = vmatpush1.msra.mxu0 0.0
        %1047 = vmatprep.subr.mxu0 0.0
        %1048 = vmatpush1.msra.mxu0 0.0
        %1049 = vmatprep.subr.mxu0 0.0
        %1050 = vmatpush1.msra.mxu0 0.0
        %1051 = vmatprep.subr.mxu0 0.0
        %1052 = vmatpush1.msra.mxu0 0.0
        %1053 = vmatprep.subr.mxu0 0.0
        %1054 = vmatpush1.msra.mxu0 0.0
        %1055 = vmatprep.subr.mxu0 0.0
        %1056 = vmatpush1.msra.mxu0 0.0
        %1057 = vmatprep.subr.mxu0 0.0
        %1058 = vmatpush1.msra.mxu0 0.0
        %1059 = vmatprep.subr.mxu0 0.0
        %1060 = vmatpush1.msra.mxu0 0.0
        %1061 = vmatprep.subr.mxu0 0.0
        %1062 = vmatpush1.msra.mxu0 0.0
        %1063 = vmatprep.subr.mxu0 0.0
        %1064 = vmatpush1.msra.mxu0 0.0
        %1065 = vmatprep.subr.mxu0 0.0
        %1066 = vmatpush1.msra.mxu0 0.0
        %1067 = vmatprep.subr.mxu0 0.0
        %1068 = vmatpush1.msra.mxu0 0.0
        %1069 = vmatprep.subr.mxu0 0.0
        %1070 = vmatpush1.msra.mxu0 0.0
        %1071 = vmatprep.subr.mxu0 0.0
        %1072 = vmatpush1.msra.mxu0 0.0
        %1073 = vmatprep.subr.mxu0 0.0
        %1074 = vmatpush1.msra.mxu0 0.0
        %1075 = vmatprep.subr.mxu0 0.0
        %1076 = vmatpush1.msra.mxu0 0.0
        %1077 = vmatprep.subr.mxu0 0.0
        %1078 = vmatpush1.msra.mxu0 0.0
        %1079 = vmatprep.subr.mxu0 0.0
        %1080 = vmatpush1.msra.mxu0 0.0
        %1081 = vmatprep.subr.mxu0 0.0
        %1082 = vmatpush1.msra.mxu0 0.0
        %1083 = vmatprep.subr.mxu0 0.0
        %1084 = vmatpush1.msra.mxu0 0.0
        %1085 = vmatprep.subr.mxu0 0.0
        %1086 = vmatpush1.msra.mxu0 0.0
        %1087 = vmatprep.subr.mxu0 0.0
        %1088 = vmatpush1.msra.mxu0 0.0
        %1089 = vmatprep.subr.mxu0 0.0
        %1090 = vmatpush1.msra.mxu0 0.0
        %1091 = vmatprep.subr.mxu0 0.0
        %1092 = vmatpush1.msra.mxu0 0.0
        %1093 = vmatprep.subr.mxu0 0.0
        %1094 = vmatpush1.msra.mxu0 0.0
        %1095 = vmatprep.subr.mxu0 0.0
        %1096 = vmatpush1.msra.mxu0 0.0
        %1097 = vmatprep.subr.mxu0 0.0
        %1098 = vmatpush1.msra.mxu0 0.0
        %1099 = vmatprep.subr.mxu0 0.0
        %1100 = vmatpush1.msra.mxu0 0.0
        %1101 = vmatprep.mubr.f32.mxu0 0.0
        %1102 = vmatmul.mubr.f32.gmra.mrb[0].mxu0 %v1026
        %v1103 = vpop.f32.mrb[0].mxu0
        %v1104 = vadd.f32 0.0, %v1103
        %v1105 = vpop.f32.mrb[0].mxu0
        %1106 = vmatprep.mubr.f32.mxu0 0.0
        %1107 = vmatmul.mubr.f32.gmra.mrb[0].mxu0 %v1029
        %v1108 = vpop.f32.mrb[0].mxu0
        %v1109 = vadd.f32 0.0, %v1108
        %v1110 = vpop.f32.mrb[0].mxu0
        %1111 = vmatprep.mubr.f32.mxu0 0.0
        %1112 = vmatmul.mubr.f32.gmra.mrb[0].mxu0 %v1032
        %v1113 = vpop.f32.mrb[0].mxu0
        %v1114 = vadd.f32 0.0, %v1113
        %v1115 = vpop.f32.mrb[0].mxu0
        %1116 = vmatprep.mubr.f32.mxu0 0.0
        %1117 = vmatmul.mubr.f32.gmra.mrb[0].mxu0 %v1035
        %v1118 = vpop.f32.mrb[0].mxu0
        %v1119 = vadd.f32 0.0, %v1118
        %v1120 = vpop.f32.mrb[0].mxu0
        %1121 = vdwg.mxu0
        %1123 = vrot.lane.b32.xlu0 %v568, 96
        %v1124 = vpop.permute.xlu0 %1123
        %v1126 = vmul.f32 %v1022, %v1124
        %1131 = vrot.lane.b32.xlu0 %v624, 96
        %v1132 = vpop.permute.xlu0 %1131
        %1133 = vrot.lane.b32.xlu0 %v627, 96
        %v1134 = vpop.permute.xlu0 %1133
        %1135 = vrot.lane.b32.xlu0 %v632, 96
        %v1136 = vpop.permute.xlu0 %1135
        %1137 = vrot.lane.b32.xlu0 %v635, 96
        %v1138 = vpop.permute.xlu0 %1137
        %v1143 = vmul.f32 %v1104, %v1132
        %v1144 = vmul.f32 %v1109, %v1134
        %v1145 = vmul.f32 %v1114, %v1136
        %v1146 = vmul.f32 %v1119, %v1138
        %v1147 = vsel %vm399, %v1143, 0.0
        %v1148 = vsel %vm399, %v1144, 0.0
        %v1149 = vadd.f32 %v1147, %v1148
        %v1150 = vrot.slane %v1149, 4
        %v1151 = vadd.f32 %v1149, %v1150
        %v1152 = vrot.slane %v1151, 2
        %v1153 = vadd.f32 %v1151, %v1152
        %v1154 = vrot.slane %v1153, 1
        %v1155 = vadd.f32 %v1153, %v1154
        %v1156 = vsel %vm399, %v1145, 0.0
        %v1157 = vsel %vm399, %v1146, 0.0
        %v1158 = vadd.f32 %v1156, %v1157
        %v1159 = vrot.slane %v1158, 4
        %v1160 = vadd.f32 %v1158, %v1159
        %v1161 = vrot.slane %v1160, 2
        %v1162 = vadd.f32 %v1160, %v1161
        %v1163 = vrot.slane %v1162, 1
        %v1164 = vadd.f32 %v1162, %v1163
        %v1167 = vsel %vm452, %v1164, %v1155
        %v1169 = vadd.f32 %v1126, %v1167
        %v1170 = vpack.c.bf16 %v1169, %v1169
        %v1171 = vld [vmem:[%s7] sm:$0xf]
        %v1172 = vld [vmem:[%s7 + $0x4] sm:$0xf]
        %v1173 = vld [vmem:[%s7 + $0x8] sm:$0xf]
        %v1174 = vld [vmem:[%s7 + $0xc] sm:$0xf]
        %v1175 = vld [vmem:[%s8] sm:$0x1]
        %v1177 = vlaneseq
        %v1178 = vshrl.u32 %v1177, 7
        %v1179 = vsub.s32 0, %v1178
        %v1180 = vrot.slane %v1175, %v1179
        %v1186 = vunpack.c.l.b16 %v1171
        %v1187 = vunpack.c.l.b16 %v1172
        %v1188 = vunpack.c.l.b16 %v1173
        %v1189 = vunpack.c.l.b16 %v1174
        %v1190 = vpack.c.b16 %v1187, %v1186
        %v1191 = vpack.c.b16 %v1189, %v1188
        %v1195 = vsel %vm399, %v1170, 0
        %1197 = vmatprep.subr.bf16.mxu0 0
        %1198 = vmatpush1.bf16.msra.mxu0 %v1190
        %1199 = vmatprep.subr.bf16.mxu0 0
        %1200 = vmatpush1.bf16.msra.mxu0 %v1191
        %1201 = vmatprep.subr.bf16.mxu0 0
        %1202 = vmatpush1.bf16.msra.mxu0 0
        %1203 = vmatprep.subr.bf16.mxu0 0
        %1204 = vmatpush1.bf16.msra.mxu0 0
        %1205 = vmatprep.subr.bf16.mxu0 0
        %1206 = vmatpush1.bf16.msra.mxu0 0
        %1207 = vmatprep.subr.bf16.mxu0 0
        %1208 = vmatpush1.bf16.msra.mxu0 0
        %1209 = vmatprep.subr.bf16.mxu0 0
        %1210 = vmatpush1.bf16.msra.mxu0 0
        %1211 = vmatprep.subr.bf16.mxu0 0
        %1212 = vmatpush1.bf16.msra.mxu0 0
        %1213 = vmatprep.subr.bf16.mxu0 0
        %1214 = vmatpush1.bf16.msra.mxu0 0
        %1215 = vmatprep.subr.bf16.mxu0 0
        %1216 = vmatpush1.bf16.msra.mxu0 0
        %1217 = vmatprep.subr.bf16.mxu0 0
        %1218 = vmatpush1.bf16.msra.mxu0 0
        %1219 = vmatprep.subr.bf16.mxu0 0
        %1220 = vmatpush1.bf16.msra.mxu0 0
        %1221 = vmatprep.subr.bf16.mxu0 0
        %1222 = vmatpush1.bf16.msra.mxu0 0
        %1223 = vmatprep.subr.bf16.mxu0 0
        %1224 = vmatpush1.bf16.msra.mxu0 0
        %1225 = vmatprep.subr.bf16.mxu0 0
        %1226 = vmatpush1.bf16.msra.mxu0 0
        %1227 = vmatprep.subr.bf16.mxu0 0
        %1228 = vmatpush1.bf16.msra.mxu0 0
        %1229 = vmatprep.mubr.bf16.mxu0 0
        %1230 = vmatmul.mubr.bf16.gmra.mrb[0].mxu0 %v1195
        %v1231 = vpop.f32.mrb[0].mxu0
        %v1232 = vadd.f32 %v1180, %v1231
        %v1233 = vpop.f32.mrb[0].mxu0
        %v1234 = vpop.f32.mrb[0].mxu0
        %v1235 = vpop.f32.mrb[0].mxu0
        %1236 = vdwg.mxu0
        %vm1237 = vcmask 123904
        %1238 = vst.msk [vmem:[%s382] sm:$0x3] %vm1237, %v1232
        %s1239 = sand.u32 %s269, 1
        %s1240 = scalar_lea.sflag [#allocation3], %s1239
        %s1241 = sand.u32 %s269, 1
        %s1242 = smul.addr %s1241, 2
        %s1243 = scalar_lea.vmem [#allocation2], %s1242
        // Predicated region
        $region65: #{attention_pool_2d.1} parent=63 // pred_check
          %p1244 = pneg %p279
        $region66: #{attention_pool_2d.1} parent=63 // pred_check_branch
          %1246 = sbr.rel (%p1244) target = $region68
        $region67: #{attention_pool_2d.1} parent=63 // pred_region
          %s1248 = ssub.s32 32, 32
          %1249 = vsyncadd %s1240, %s1248
          %s1250 = smul.addr %s25, 32
          %s1251 = scalar_lea.hbm %s11, %s1250
          %s1253 = sshll.u32 %s1243, 4
          %s1254 = int_to_ptr.vmem [resolvable:$true] %s1253
          %1256 = dma.vmem_to_hbm [thread:$0]  %s1254, 32, %s1251, %s1240
        $region68: #{attention_pool_2d.1} parent=63 // pred_fallthru
          _
      $region64: #{attention_pool_2d.1} parent=5 // pred_fallthru
        _
      %p1257 = scmp.le.s32.totalorder 2, %s20
      // Predicated region
      $region69: #{attention_pool_2d.1} parent=5 // pred_check
        %p1258 = pneg %p1257
      $region70: #{attention_pool_2d.1} parent=5 // pred_check_branch
        %1260 = sbr.rel (%p1258) target = $region72
      $region71: #{attention_pool_2d.1} parent=5 // pred_region
        %s1261 = ssub.s32 %s20, 2
        // Predicated region
        $region73: #{attention_pool_2d.1} parent=71 // pred_check
          %p1262 = pneg %p285
        $region74: #{attention_pool_2d.1} parent=71 // pred_check_branch
          %1264 = sbr.rel (%p1262) target = $region76
        $region75: #{attention_pool_2d.1} parent=71 // pred_region
          %s1265 = sand.u32 %s270, 1
          %s1266 = scalar_lea.sflag [#allocation3], %s1265
          %s1267 = sand.u32 %s270, 1
          %s1268 = smul.addr %s1267, 2
          %s1269 = scalar_lea.vmem [#allocation2], %s1268
          %1270 = dma.done %s1266, 32
        $region76: #{attention_pool_2d.1} parent=71 // pred_fallthru
          _
      $region72: #{attention_pool_2d.1} parent=5 // pred_fallthru
        _
    $region6: #{attention_pool_2d.1} parent=1 // loop_footer
      %s24 = sadd.s32 1, %s20
    $region7: #{attention_pool_2d.1} parent=1 // loop_footer_branch
      %19 = sbr.rel target = $region3
    $region8: #{attention_pool_2d.1} parent=1 // loop_exit
      _
    %1271 = vsyncpa [#allocation3], 1
    %s1272 = scalar_lea.sflag [#allocation3], 1
    %1273 = vsyncpa %s1272, 1

</llo_original>
